<compile_context>
chip_gen: v7x
topology: tpu7x:2x2x1
jax: 0.10.0
libtpu: 0.0.40
codegen_flags: <defaults>
</compile_context>

<pallas_src>
import functools

import jax
import jax.numpy as jnp
from jax.experimental import pallas as pl
from jax.experimental.pallas import tpu as pltpu

INPUT_DIM = 768
DIMS = [INPUT_DIM, 256, 128, 64, 32, 1]
BN_EPS = 1e-5


def _mlp_kernel(x_ref,
                w1_ref, b1_ref,
                w2_ref, b2_ref,
                w3_ref, b3_ref,
                w4_ref, b4_ref,
                w5_ref, b5_ref,
                o_ref):
    # Cast the f32 input tile to bf16 in VMEM (no extra HBM traffic); accumulate in f32.
    h = x_ref[...].astype(jnp.bfloat16)

    # Linear(768,256) + ReLU   (BN1 already folded into w2/b2)
    h = jnp.dot(h, w1_ref[...], preferred_element_type=jnp.float32) + b1_ref[...]
    h = jnp.maximum(h, 0.0)

    # Linear(256,128) + ReLU   (BN2 folded into w3/b3)
    h = jnp.dot(h.astype(jnp.bfloat16), w2_ref[...],
                preferred_element_type=jnp.float32) + b2_ref[...]
    h = jnp.maximum(h, 0.0)

    # Linear(128,64) + ReLU    (BN3 folded into w4/b4)
    h = jnp.dot(h.astype(jnp.bfloat16), w3_ref[...],
                preferred_element_type=jnp.float32) + b3_ref[...]
    h = jnp.maximum(h, 0.0)

    # Linear(64,32) + ReLU
    h = jnp.dot(h.astype(jnp.bfloat16), w4_ref[...],
                preferred_element_type=jnp.float32) + b4_ref[...]
    h = jnp.maximum(h, 0.0)

    # Linear(32,1): N=1 would waste an MXU pass -> VPU multiply + lane reduction (XLU).
    y = jnp.sum(h * w5_ref[...], axis=-1, keepdims=True) + b5_ref[0, 0]
    o_ref[...] = y.astype(o_ref.dtype)


@functools.partial(jax.jit, static_argnames=("tb",))
def mlp_pallas(x, params, tb=256):
    """x: (B, 768) float32. params: flat list matching kernel arg order (b5 last)."""
    B = x.shape[0]
    pad = (-B) % tb
    if pad:
        x = jnp.pad(x, ((0, pad), (0, 0)))
    Bp = B + pad

    def _resident(arr):
        # Full-array block with a constant index map -> stays resident across batch tiles.
        return pl.BlockSpec(arr.shape, lambda i: (0,) * arr.ndim)

    in_specs = [pl.BlockSpec((tb, INPUT_DIM), lambda i: (i, 0))]
    in_specs += [_resident(p) for p in params[:-1]]          # weights / biases / w5 row in VMEM
    in_specs += [pl.BlockSpec(memory_space=pltpu.MemorySpace.SMEM)]  # (1,1) final bias in SMEM

    out_spec = pl.BlockSpec((tb, 1), lambda i: (i, 0))

    out = pl.pallas_call(
        _mlp_kernel,
        out_shape=jax.ShapeDtypeStruct((Bp, 1), jnp.float32),
        grid_spec=pltpu.PrefetchScalarGridSpec(
            num_scalar_prefetch=0,
            grid=(Bp // tb,),
            in_specs=in_specs,
            out_specs=out_spec,
        ),
        compiler_params=pltpu.CompilerParams(
            dimension_semantics=("parallel",),
            # Headroom for larger tb: above v5e's 16 MiB scoped default, within v7x's 64 MiB.
            vmem_limit_bytes=32 * 1024 * 1024,
        ),
    )(x, *params)
    return out[:B]


def make_params(key):
    """Deterministic params mirroring the PyTorch module's shapes, BN folded, weights bf16."""
    keys = jax.random.split(key, 32)
    ki = 0
    raw = []  # (wT f32 (in,out), b (1,out), bn_scale (1,out)|None, bn_shift (1,out)|None)
    for li in range(5):
        d_in, d_out = DIMS[li], DIMS[li + 1]
        # nn.Linear weight is (out, in); pre-transpose to (in, out) so the kernel does x @ W.
        w = jax.random.normal(keys[ki], (d_out, d_in), jnp.float32) / jnp.sqrt(d_in); ki += 1
        b = jax.random.normal(keys[ki], (d_out,), jnp.float32) * 0.01; ki += 1
        wT = jnp.transpose(w)
        b2d = b.reshape(1, d_out)
        if li < 3:
            # BatchNorm1d(d_out), eval mode: y = gamma*(x - mean)/sqrt(var+eps) + beta
            gamma = 1.0 + 0.1 * jax.random.normal(keys[ki], (d_out,), jnp.float32); ki += 1
            beta = 0.1 * jax.random.normal(keys[ki], (d_out,), jnp.float32); ki += 1
            r_mean = 0.05 * jax.random.normal(keys[ki], (d_out,), jnp.float32); ki += 1
            r_var = jnp.abs(1.0 + 0.1 * jax.random.normal(keys[ki], (d_out,), jnp.float32)); ki += 1
            scale = gamma / jnp.sqrt(r_var + BN_EPS)
            shift = beta - r_mean * scale
            raw.append((wT, b2d, scale.reshape(1, d_out), shift.reshape(1, d_out)))
        else:
            raw.append((wT, b2d, None, None))

    # Fold BN_i (affine applied after ReLU of layer i) into Linear_{i+1}:
    #   (s*r + t) @ W + b  ==  r @ (diag(s) W) + (t @ W + b)
    folded = []
    for li in range(5):
        wT, b2d, _, _ = raw[li]
        if li >= 1 and raw[li - 1][2] is not None:
            s_prev = raw[li - 1][2].reshape(-1, 1)   # (d_in, 1)
            t_prev = raw[li - 1][3]                  # (1, d_in)
            b2d = b2d + t_prev @ wT                  # uses original wT
            wT = wT * s_prev
        folded.append((wT, b2d))

    params = []
    for li in range(4):
        wT, b2d = folded[li]
        params += [wT.astype(jnp.bfloat16), b2d]     # bf16 weights, f32 biases
    w5T, b5 = folded[4]                              # (32,1), (1,1)
    params += [w5T.reshape(1, -1).astype(jnp.float32),   # (1,32) row for the VPU tail
               b5.reshape(1, 1).astype(jnp.float32)]     # (1,1) scalar -> SMEM
    return params, raw


def mlp_reference_f32(x, raw_layers):
    """Unfolded f32 reference mirroring the PyTorch eval-mode forward exactly."""
    h = x
    for li, (wT, b, s, t) in enumerate(raw_layers):
        h = h @ wT + b
        if li < 4:
            h = jnp.maximum(h, 0.0)
        if s is not None:
            h = h * s + t
    return h


def mlp_reference_matched(x, params):
    """Pure-JAX reference with the same folded params / bf16 dtype policy as the kernel."""
    w1, b1, w2, b2, w3, b3, w4, b4, w5, b5 = params
    h = jnp.maximum(jnp.dot(x.astype(jnp.bfloat16), w1,
                            preferred_element_type=jnp.float32) + b1, 0.0)
    for w, b in ((w2, b2), (w3, b3), (w4, b4)):
        h = jnp.maximum(jnp.dot(h.astype(jnp.bfloat16), w,
                                preferred_element_type=jnp.float32) + b, 0.0)
    return jnp.sum(h * w5, axis=-1, keepdims=True) + b5


if __name__ == "__main__":
    key = jax.random.PRNGKey(0)
    k_x, k_p = jax.random.split(key)

    # Deliberately not a multiple of tb to exercise the ragged-batch padding path;
    # padded size 512 with tb=256 gives a 2-iteration parallel grid (both v7x TCs).
    B = 500
    x = jax.random.normal(k_x, (B, INPUT_DIM), jnp.float32)

    params, raw_layers = make_params(k_p)

    out = mlp_pallas(x, params)          # default tb=256
    out = jax.block_until_ready(out)
    assert out.shape == (B, 1)

    # Tight check against a pure-JAX reference with identical math/dtype policy.
    ref_matched = mlp_reference_matched(x, params)
    assert jnp.allclose(out, ref_matched, atol=1e-3, rtol=1e-3), "mismatch vs matched reference"

    # Loose check against the original f32 eval-mode semantics (bf16 rounding only).
    ref_f32 = mlp_reference_f32(x, raw_layers)
    assert jnp.allclose(out, ref_f32, atol=1e-1, rtol=1e-1), "mismatch vs f32 reference"

    print("KERNEL_OK")
</pallas_src>

<mosaic_0001>
module attributes {stable_mosaic.version = 11 : i64} {
  func.func @_mlp_kernel(%arg0: i32, %arg1: memref<256x768xf32, #tpu.memory_space<vmem>>, %arg2: memref<768x256xbf16, #tpu.memory_space<vmem>>, %arg3: memref<1x256xf32, #tpu.memory_space<vmem>>, %arg4: memref<256x128xbf16, #tpu.memory_space<vmem>>, %arg5: memref<1x128xf32, #tpu.memory_space<vmem>>, %arg6: memref<128x64xbf16, #tpu.memory_space<vmem>>, %arg7: memref<1x64xf32, #tpu.memory_space<vmem>>, %arg8: memref<64x32xbf16, #tpu.memory_space<vmem>>, %arg9: memref<1x32xf32, #tpu.memory_space<vmem>>, %arg10: memref<1x32xf32, #tpu.memory_space<vmem>>, %arg11: memref<1x1xf32, #tpu.memory_space<smem>>, %arg12: memref<256x1xf32, #tpu.memory_space<vmem>>) attributes {dimension_semantics = [#tpu.dimension_semantics<parallel>], iteration_bounds = array<i64: 2>, scalar_prefetch = 0 : i64, scratch_operands = 0 : i64, tpu.core_type = #tpu.core_type<tc>, window_params = [{transform_indices = @transform_0, window_bounds = array<i64: 256, 768>}, {pipeline_mode = #tpu.pipeline_mode<synchronous>, transform_indices = @transform_1, window_bounds = array<i64: 768, 256>}, {pipeline_mode = #tpu.pipeline_mode<synchronous>, transform_indices = @transform_2, window_bounds = array<i64: 1, 256>}, {pipeline_mode = #tpu.pipeline_mode<synchronous>, transform_indices = @transform_3, window_bounds = array<i64: 256, 128>}, {pipeline_mode = #tpu.pipeline_mode<synchronous>, transform_indices = @transform_4, window_bounds = array<i64: 1, 128>}, {pipeline_mode = #tpu.pipeline_mode<synchronous>, transform_indices = @transform_5, window_bounds = array<i64: 128, 64>}, {pipeline_mode = #tpu.pipeline_mode<synchronous>, transform_indices = @transform_6, window_bounds = array<i64: 1, 64>}, {pipeline_mode = #tpu.pipeline_mode<synchronous>, transform_indices = @transform_7, window_bounds = array<i64: 64, 32>}, {pipeline_mode = #tpu.pipeline_mode<synchronous>, transform_indices = @transform_8, window_bounds = array<i64: 1, 32>}, {pipeline_mode = #tpu.pipeline_mode<synchronous>, transform_indices = @transform_9, window_bounds = array<i64: 1, 32>}, {transform_indices = @transform_10, window_bounds = array<i64: 1, 1>}, {transform_indices = @transform_11, window_bounds = array<i64: 256, 1>}]} {
    %c0 = arith.constant 0 : index
    %c0_0 = arith.constant 0 : index
    %0 = vector.load %arg1[%c0, %c0_0] : memref<256x768xf32, #tpu.memory_space<vmem>>, vector<256x768xf32>
    %1 = arith.truncf %0 : vector<256x768xf32> to vector<256x768xbf16>
    %c0_1 = arith.constant 0 : index
    %c0_2 = arith.constant 0 : index
    %2 = vector.load %arg2[%c0_1, %c0_2] : memref<768x256xbf16, #tpu.memory_space<vmem>>, vector<768x256xbf16>
    %cst = arith.constant dense<0.000000e+00> : vector<256x256xf32>
    %3 = tpu.matmul %1, %2, %cst {dimension_numbers = #tpu.dot_dimension_numbers<[1], [0], [0], [1], [0, 0, 1, 1], [], []>} : vector<256x768xbf16>, vector<768x256xbf16>, vector<256x256xf32> -> vector<256x256xf32>
    %c0_3 = arith.constant 0 : index
    %c0_4 = arith.constant 0 : index
    %4 = vector.load %arg3[%c0_3, %c0_4] : memref<1x256xf32, #tpu.memory_space<vmem>>, vector<1x256xf32>
    %5 = vector.broadcast %4 : vector<1x256xf32> to vector<256x256xf32>
    %6 = arith.addf %3, %5 : vector<256x256xf32>
    %cst_5 = arith.constant 0.000000e+00 : f32
    %7 = vector.broadcast %cst_5 : f32 to vector<256x256xf32>
    %8 = arith.maximumf %6, %7 : vector<256x256xf32>
    %9 = arith.truncf %8 : vector<256x256xf32> to vector<256x256xbf16>
    %c0_6 = arith.constant 0 : index
    %c0_7 = arith.constant 0 : index
    %10 = vector.load %arg4[%c0_6, %c0_7] : memref<256x128xbf16, #tpu.memory_space<vmem>>, vector<256x128xbf16>
    %cst_8 = arith.constant dense<0.000000e+00> : vector<256x128xf32>
    %11 = tpu.matmul %9, %10, %cst_8 {dimension_numbers = #tpu.dot_dimension_numbers<[1], [0], [0], [1], [0, 0, 1, 1], [], []>} : vector<256x256xbf16>, vector<256x128xbf16>, vector<256x128xf32> -> vector<256x128xf32>
    %c0_9 = arith.constant 0 : index
    %c0_10 = arith.constant 0 : index
    %12 = vector.load %arg5[%c0_9, %c0_10] : memref<1x128xf32, #tpu.memory_space<vmem>>, vector<1x128xf32>
    %13 = vector.broadcast %12 : vector<1x128xf32> to vector<256x128xf32>
    %14 = arith.addf %11, %13 : vector<256x128xf32>
    %cst_11 = arith.constant 0.000000e+00 : f32
    %15 = vector.broadcast %cst_11 : f32 to vector<256x128xf32>
    %16 = arith.maximumf %14, %15 : vector<256x128xf32>
    %17 = arith.truncf %16 : vector<256x128xf32> to vector<256x128xbf16>
    %c0_12 = arith.constant 0 : index
    %c0_13 = arith.constant 0 : index
    %18 = vector.load %arg6[%c0_12, %c0_13] : memref<128x64xbf16, #tpu.memory_space<vmem>>, vector<128x64xbf16>
    %cst_14 = arith.constant dense<0.000000e+00> : vector<256x64xf32>
    %19 = tpu.matmul %17, %18, %cst_14 {dimension_numbers = #tpu.dot_dimension_numbers<[1], [0], [0], [1], [0, 0, 1, 1], [], []>} : vector<256x128xbf16>, vector<128x64xbf16>, vector<256x64xf32> -> vector<256x64xf32>
    %c0_15 = arith.constant 0 : index
    %c0_16 = arith.constant 0 : index
    %20 = vector.load %arg7[%c0_15, %c0_16] : memref<1x64xf32, #tpu.memory_space<vmem>>, vector<1x64xf32>
    %21 = vector.broadcast %20 : vector<1x64xf32> to vector<256x64xf32>
    %22 = arith.addf %19, %21 : vector<256x64xf32>
    %cst_17 = arith.constant 0.000000e+00 : f32
    %23 = vector.broadcast %cst_17 : f32 to vector<256x64xf32>
    %24 = arith.maximumf %22, %23 : vector<256x64xf32>
    %25 = arith.truncf %24 : vector<256x64xf32> to vector<256x64xbf16>
    %c0_18 = arith.constant 0 : index
    %c0_19 = arith.constant 0 : index
    %26 = vector.load %arg8[%c0_18, %c0_19] : memref<64x32xbf16, #tpu.memory_space<vmem>>, vector<64x32xbf16>
    %cst_20 = arith.constant dense<0.000000e+00> : vector<256x32xf32>
    %27 = tpu.matmul %25, %26, %cst_20 {dimension_numbers = #tpu.dot_dimension_numbers<[1], [0], [0], [1], [0, 0, 1, 1], [], []>} : vector<256x64xbf16>, vector<64x32xbf16>, vector<256x32xf32> -> vector<256x32xf32>
    %c0_21 = arith.constant 0 : index
    %c0_22 = arith.constant 0 : index
    %28 = vector.load %arg9[%c0_21, %c0_22] : memref<1x32xf32, #tpu.memory_space<vmem>>, vector<1x32xf32>
    %29 = vector.broadcast %28 : vector<1x32xf32> to vector<256x32xf32>
    %30 = arith.addf %27, %29 : vector<256x32xf32>
    %cst_23 = arith.constant 0.000000e+00 : f32
    %31 = vector.broadcast %cst_23 : f32 to vector<256x32xf32>
    %32 = arith.maximumf %30, %31 : vector<256x32xf32>
    %c0_24 = arith.constant 0 : index
    %c0_25 = arith.constant 0 : index
    %33 = vector.load %arg10[%c0_24, %c0_25] : memref<1x32xf32, #tpu.memory_space<vmem>>, vector<1x32xf32>
    %34 = vector.broadcast %33 : vector<1x32xf32> to vector<256x32xf32>
    %35 = arith.mulf %32, %34 : vector<256x32xf32>
    %cst_26 = arith.constant dense<0.000000e+00> : vector<256xf32>
    %36 = vector.multi_reduction <add>, %35, %cst_26 [1] : vector<256x32xf32> to vector<256xf32>
    %37 = vector.shape_cast %36 : vector<256xf32> to vector<256x1xf32>
    %c0_27 = arith.constant 0 : index
    %c0_28 = arith.constant 0 : index
    %38 = memref.load %arg11[%c0_27, %c0_28] : memref<1x1xf32, #tpu.memory_space<smem>>
    %39 = vector.broadcast %38 : f32 to vector<256x1xf32>
    %40 = arith.addf %37, %39 : vector<256x1xf32>
    %c0_29 = arith.constant 0 : index
    %c0_30 = arith.constant 0 : index
    %41 = vector.load %arg12[%c0_29, %c0_30] : memref<256x1xf32, #tpu.memory_space<vmem>>, vector<256x1xf32>
    tpu.vector_store %arg12[%c0_29, %c0_30], %40 {strides = array<i32>} : memref<256x1xf32, #tpu.memory_space<vmem>>, vector<256x1xf32>,
    return
  }
  func.func @transform_0(%arg0: i32) -> (i32, i32) {
    %c0_i32 = arith.constant 0 : i32
    %c0_i32_0 = arith.constant 0 : i32
    return %arg0, %c0_i32 : i32, i32
  }
  func.func @transform_1(%arg0: i32) -> (i32, i32) {
    %c0_i32 = arith.constant 0 : i32
    %c0_i32_0 = arith.constant 0 : i32
    %c0_i32_1 = arith.constant 0 : i32
    return %c0_i32, %c0_i32_0 : i32, i32
  }
  func.func @transform_2(%arg0: i32) -> (i32, i32) {
    %c0_i32 = arith.constant 0 : i32
    %c0_i32_0 = arith.constant 0 : i32
    %c0_i32_1 = arith.constant 0 : i32
    return %c0_i32, %c0_i32_0 : i32, i32
  }
  func.func @transform_3(%arg0: i32) -> (i32, i32) {
    %c0_i32 = arith.constant 0 : i32
    %c0_i32_0 = arith.constant 0 : i32
    %c0_i32_1 = arith.constant 0 : i32
    return %c0_i32, %c0_i32_0 : i32, i32
  }
  func.func @transform_4(%arg0: i32) -> (i32, i32) {
    %c0_i32 = arith.constant 0 : i32
    %c0_i32_0 = arith.constant 0 : i32
    %c0_i32_1 = arith.constant 0 : i32
    return %c0_i32, %c0_i32_0 : i32, i32
  }
  func.func @transform_5(%arg0: i32) -> (i32, i32) {
    %c0_i32 = arith.constant 0 : i32
    %c0_i32_0 = arith.constant 0 : i32
    %c0_i32_1 = arith.constant 0 : i32
    return %c0_i32, %c0_i32_0 : i32, i32
  }
  func.func @transform_6(%arg0: i32) -> (i32, i32) {
    %c0_i32 = arith.constant 0 : i32
    %c0_i32_0 = arith.constant 0 : i32
    %c0_i32_1 = arith.constant 0 : i32
    return %c0_i32, %c0_i32_0 : i32, i32
  }
  func.func @transform_7(%arg0: i32) -> (i32, i32) {
    %c0_i32 = arith.constant 0 : i32
    %c0_i32_0 = arith.constant 0 : i32
    %c0_i32_1 = arith.constant 0 : i32
    return %c0_i32, %c0_i32_0 : i32, i32
  }
  func.func @transform_8(%arg0: i32) -> (i32, i32) {
    %c0_i32 = arith.constant 0 : i32
    %c0_i32_0 = arith.constant 0 : i32
    %c0_i32_1 = arith.constant 0 : i32
    return %c0_i32, %c0_i32_0 : i32, i32
  }
  func.func @transform_9(%arg0: i32) -> (i32, i32) {
    %c0_i32 = arith.constant 0 : i32
    %c0_i32_0 = arith.constant 0 : i32
    %c0_i32_1 = arith.constant 0 : i32
    return %c0_i32, %c0_i32_0 : i32, i32
  }
  func.func @transform_10(%arg0: i32) -> (i32, i32) {
    %c0_i32 = arith.constant 0 : i32
    %c0_i32_0 = arith.constant 0 : i32
    %c0_i32_1 = arith.constant 0 : i32
    return %c0_i32, %c0_i32_0 : i32, i32
  }
  func.func @transform_11(%arg0: i32) -> (i32, i32) {
    %c0_i32 = arith.constant 0 : i32
    %c0_i32_0 = arith.constant 0 : i32
    return %arg0, %c0_i32 : i32, i32
  }
}

</mosaic_0001>

<llo_original>
// kernel: mlp_pallas.1
$region0: #{mlp_pallas.1}
  #allocation0 [shape = 'u32[]', space=smem, size = 0x4, offset = 0x4, fixed_abs, tag = 'smem constant byte address 0x4 - core index']
  #allocation1 [shape = 'u32[144,128]{1,0:T(1,128)}', space=vmem, size = 0x12000, scoped, tag = 'internal scratch']
  #allocation2 [shape = 'f32[1,1]{1,0:T(1,128)S(6)}', space=smem, size = 0x200, scoped, tag = 'scoped memory for mlp_pallas.1']
  %s0 = inlined_call_operand.vmem [shape: f32[512,768], index: 0, kind: input, shape index: {}]
  %s1 = inlined_call_operand.vmem [shape: bf16[768,256], index: 1, kind: input, shape index: {}]
  %s2 = inlined_call_operand.vmem [shape: f32[1,256], index: 2, kind: input, shape index: {}]
  %s3 = inlined_call_operand.vmem [shape: bf16[256,128], index: 3, kind: input, shape index: {}]
  %s4 = inlined_call_operand.vmem [shape: f32[1,128], index: 4, kind: input, shape index: {}]
  %s5 = inlined_call_operand.vmem [shape: bf16[128,64], index: 5, kind: input, shape index: {}]
  %s6 = inlined_call_operand.vmem [shape: f32[1,64], index: 6, kind: input, shape index: {}]
  %s7 = inlined_call_operand.vmem [shape: bf16[64,32], index: 7, kind: input, shape index: {}]
  %s8 = inlined_call_operand.vmem [shape: f32[1,32], index: 8, kind: input, shape index: {}]
  %s9 = inlined_call_operand.vmem [shape: f32[1,32], index: 9, kind: input, shape index: {}]
  %s10 = inlined_call_operand.<no memory space> [shape: f32[1,1], index: 10, kind: input, shape index: {}]
  %s11 = inlined_call_operand.vmem [shape: f32[512,1], index: 11, kind: output, shape index: {}]
  %s12 = sld [smem:[#allocation0]]
  $region77: #{mlp_pallas.1} parent=0
    _
  %s14 = ssub.s32 1, %s12
  %s15 = scalar_select 0, %s14, %s12
  %16 = sst [smem:[#allocation2]] %s10
  loop: start=0, step=1, limit=4
  $region2: #{mlp_pallas.1} parent=0 // loop_pre_header
    _
  $region3: #{mlp_pallas.1} parent=0 // loop_header
    %s18 = sphi 0, %s22
    %p19 = scmp.ge.s32.totalorder %s18, 4
    %s28 = sphi 0, %s30
    %s31 = sphi 0, %s28
    %s32 = sphi 0, %s31
    %s48 = sphi 0, %s32
    %s52 = sphi 0, %s52
    %s54 = sphi 0, %s52
    %s55 = sphi 0, %s54
    %s69 = sphi 0, %s55
    %s73 = sphi 0, %s73
    %s75 = sphi 0, %s73
    %s76 = sphi 0, %s75
    %s90 = sphi 0, %s76
    %s94 = sphi 0, %s94
    %s96 = sphi 0, %s94
    %s97 = sphi 0, %s96
    %s111 = sphi 0, %s97
    %s115 = sphi 0, %s115
    %s117 = sphi 0, %s115
    %s118 = sphi 0, %s117
    %s132 = sphi 0, %s118
    %s136 = sphi 0, %s136
    %s138 = sphi 0, %s136
    %s139 = sphi 0, %s138
    %s153 = sphi 0, %s139
    %s157 = sphi 0, %s157
    %s159 = sphi 0, %s157
    %s160 = sphi 0, %s159
    %s174 = sphi 0, %s160
    %s178 = sphi 0, %s178
    %s180 = sphi 0, %s178
    %s181 = sphi 0, %s180
    %s195 = sphi 0, %s181
    %s199 = sphi 0, %s199
    %s201 = sphi 0, %s199
    %s202 = sphi 0, %s201
    %s216 = sphi 0, %s202
    %s220 = sphi 0, %s220
    %s222 = sphi 0, %s220
    %s223 = sphi 0, %s222
    %s237 = sphi 0, %s223
    %s241 = sphi 0, %s241
    %s243 = sphi 0, %s241
    %s244 = sphi 0, %s243
    %s258 = sphi 0, %s244
    %s264 = sphi 0, %s266
    %s267 = sphi 0, %s264
    %s268 = sphi 0, %s267
    %s284 = sphi 0, %s268
  $region4: #{mlp_pallas.1} parent=0 // loop_header_branch
    %21 = sbr.rel (%p19) target = $region8
  $region5: #{mlp_pallas.1} parent=0 // loop_body
    %s23 = ssub.s32 %s18, 1
    %s24 = ssub.s32 %s18, 2
    %s25 = sadd.s32 %s18, 1
    %s26 = ssub.s32 %s18, %s25
    %p27 = scmp.eq.s32.totalorder %s26, 0
    %s29 = sadd.s32 %s28, 1
    %s30 = scalar_select %p27, %s28, %s29
    %p33 = pneg %p27
    %p34 = scmp.eq.s32.totalorder %s18, 1
    %p35 = por %p33, %p34
    %p36 = scmp.ne.s32.totalorder %s28, %s31
    %p37 = scmp.eq.s32.totalorder %s18, 0
    %p38 = por %p36, %p37
    %p39 = scmp.ne.s32.totalorder %s28, %s31
    %p40 = scmp.eq.s32.totalorder %s23, 1
    %p41 = por %p39, %p40
    %p42 = scmp.ne.s32.totalorder %s31, %s32
    %p43 = scmp.eq.s32.totalorder %s23, 0
    %p44 = por %p42, %p43
    %p45 = scmp.ne.s32.totalorder %s31, %s32
    %p46 = scmp.eq.s32.totalorder %s24, 1
    %p47 = por %p45, %p46
    %p49 = scmp.ne.s32.totalorder %s32, %s48
    %p50 = scmp.eq.s32.totalorder %s24, 0
    %p51 = por %p49, %p50
    %s53 = sadd.s32 %s52, 1
    %p56 = scmp.eq.s32.totalorder %s18, 1
    %p57 = scmp.ne.s32.totalorder %s52, %s54
    %p58 = scmp.eq.s32.totalorder %s18, 0
    %p59 = por %p57, %p58
    %p60 = scmp.ne.s32.totalorder %s52, %s54
    %p61 = scmp.eq.s32.totalorder %s23, 1
    %p62 = por %p60, %p61
    %p63 = scmp.ne.s32.totalorder %s54, %s55
    %p64 = scmp.eq.s32.totalorder %s23, 0
    %p65 = por %p63, %p64
    %p66 = scmp.ne.s32.totalorder %s54, %s55
    %p67 = scmp.eq.s32.totalorder %s24, 1
    %p68 = por %p66, %p67
    %p70 = scmp.ne.s32.totalorder %s55, %s69
    %p71 = scmp.eq.s32.totalorder %s24, 0
    %p72 = por %p70, %p71
    %s74 = sadd.s32 %s73, 1
    %p77 = scmp.eq.s32.totalorder %s18, 1
    %p78 = scmp.ne.s32.totalorder %s73, %s75
    %p79 = scmp.eq.s32.totalorder %s18, 0
    %p80 = por %p78, %p79
    %p81 = scmp.ne.s32.totalorder %s73, %s75
    %p82 = scmp.eq.s32.totalorder %s23, 1
    %p83 = por %p81, %p82
    %p84 = scmp.ne.s32.totalorder %s75, %s76
    %p85 = scmp.eq.s32.totalorder %s23, 0
    %p86 = por %p84, %p85
    %p87 = scmp.ne.s32.totalorder %s75, %s76
    %p88 = scmp.eq.s32.totalorder %s24, 1
    %p89 = por %p87, %p88
    %p91 = scmp.ne.s32.totalorder %s76, %s90
    %p92 = scmp.eq.s32.totalorder %s24, 0
    %p93 = por %p91, %p92
    %s95 = sadd.s32 %s94, 1
    %p98 = scmp.eq.s32.totalorder %s18, 1
    %p99 = scmp.ne.s32.totalorder %s94, %s96
    %p100 = scmp.eq.s32.totalorder %s18, 0
    %p101 = por %p99, %p100
    %p102 = scmp.ne.s32.totalorder %s94, %s96
    %p103 = scmp.eq.s32.totalorder %s23, 1
    %p104 = por %p102, %p103
    %p105 = scmp.ne.s32.totalorder %s96, %s97
    %p106 = scmp.eq.s32.totalorder %s23, 0
    %p107 = por %p105, %p106
    %p108 = scmp.ne.s32.totalorder %s96, %s97
    %p109 = scmp.eq.s32.totalorder %s24, 1
    %p110 = por %p108, %p109
    %p112 = scmp.ne.s32.totalorder %s97, %s111
    %p113 = scmp.eq.s32.totalorder %s24, 0
    %p114 = por %p112, %p113
    %s116 = sadd.s32 %s115, 1
    %p119 = scmp.eq.s32.totalorder %s18, 1
    %p120 = scmp.ne.s32.totalorder %s115, %s117
    %p121 = scmp.eq.s32.totalorder %s18, 0
    %p122 = por %p120, %p121
    %p123 = scmp.ne.s32.totalorder %s115, %s117
    %p124 = scmp.eq.s32.totalorder %s23, 1
    %p125 = por %p123, %p124
    %p126 = scmp.ne.s32.totalorder %s117, %s118
    %p127 = scmp.eq.s32.totalorder %s23, 0
    %p128 = por %p126, %p127
    %p129 = scmp.ne.s32.totalorder %s117, %s118
    %p130 = scmp.eq.s32.totalorder %s24, 1
    %p131 = por %p129, %p130
    %p133 = scmp.ne.s32.totalorder %s118, %s132
    %p134 = scmp.eq.s32.totalorder %s24, 0
    %p135 = por %p133, %p134
    %s137 = sadd.s32 %s136, 1
    %p140 = scmp.eq.s32.totalorder %s18, 1
    %p141 = scmp.ne.s32.totalorder %s136, %s138
    %p142 = scmp.eq.s32.totalorder %s18, 0
    %p143 = por %p141, %p142
    %p144 = scmp.ne.s32.totalorder %s136, %s138
    %p145 = scmp.eq.s32.totalorder %s23, 1
    %p146 = por %p144, %p145
    %p147 = scmp.ne.s32.totalorder %s138, %s139
    %p148 = scmp.eq.s32.totalorder %s23, 0
    %p149 = por %p147, %p148
    %p150 = scmp.ne.s32.totalorder %s138, %s139
    %p151 = scmp.eq.s32.totalorder %s24, 1
    %p152 = por %p150, %p151
    %p154 = scmp.ne.s32.totalorder %s139, %s153
    %p155 = scmp.eq.s32.totalorder %s24, 0
    %p156 = por %p154, %p155
    %s158 = sadd.s32 %s157, 1
    %p161 = scmp.eq.s32.totalorder %s18, 1
    %p162 = scmp.ne.s32.totalorder %s157, %s159
    %p163 = scmp.eq.s32.totalorder %s18, 0
    %p164 = por %p162, %p163
    %p165 = scmp.ne.s32.totalorder %s157, %s159
    %p166 = scmp.eq.s32.totalorder %s23, 1
    %p167 = por %p165, %p166
    %p168 = scmp.ne.s32.totalorder %s159, %s160
    %p169 = scmp.eq.s32.totalorder %s23, 0
    %p170 = por %p168, %p169
    %p171 = scmp.ne.s32.totalorder %s159, %s160
    %p172 = scmp.eq.s32.totalorder %s24, 1
    %p173 = por %p171, %p172
    %p175 = scmp.ne.s32.totalorder %s160, %s174
    %p176 = scmp.eq.s32.totalorder %s24, 0
    %p177 = por %p175, %p176
    %s179 = sadd.s32 %s178, 1
    %p182 = scmp.eq.s32.totalorder %s18, 1
    %p183 = scmp.ne.s32.totalorder %s178, %s180
    %p184 = scmp.eq.s32.totalorder %s18, 0
    %p185 = por %p183, %p184
    %p186 = scmp.ne.s32.totalorder %s178, %s180
    %p187 = scmp.eq.s32.totalorder %s23, 1
    %p188 = por %p186, %p187
    %p189 = scmp.ne.s32.totalorder %s180, %s181
    %p190 = scmp.eq.s32.totalorder %s23, 0
    %p191 = por %p189, %p190
    %p192 = scmp.ne.s32.totalorder %s180, %s181
    %p193 = scmp.eq.s32.totalorder %s24, 1
    %p194 = por %p192, %p193
    %p196 = scmp.ne.s32.totalorder %s181, %s195
    %p197 = scmp.eq.s32.totalorder %s24, 0
    %p198 = por %p196, %p197
    %s200 = sadd.s32 %s199, 1
    %p203 = scmp.eq.s32.totalorder %s18, 1
    %p204 = scmp.ne.s32.totalorder %s199, %s201
    %p205 = scmp.eq.s32.totalorder %s18, 0
    %p206 = por %p204, %p205
    %p207 = scmp.ne.s32.totalorder %s199, %s201
    %p208 = scmp.eq.s32.totalorder %s23, 1
    %p209 = por %p207, %p208
    %p210 = scmp.ne.s32.totalorder %s201, %s202
    %p211 = scmp.eq.s32.totalorder %s23, 0
    %p212 = por %p210, %p211
    %p213 = scmp.ne.s32.totalorder %s201, %s202
    %p214 = scmp.eq.s32.totalorder %s24, 1
    %p215 = por %p213, %p214
    %p217 = scmp.ne.s32.totalorder %s202, %s216
    %p218 = scmp.eq.s32.totalorder %s24, 0
    %p219 = por %p217, %p218
    %s221 = sadd.s32 %s220, 1
    %p224 = scmp.eq.s32.totalorder %s18, 1
    %p225 = scmp.ne.s32.totalorder %s220, %s222
    %p226 = scmp.eq.s32.totalorder %s18, 0
    %p227 = por %p225, %p226
    %p228 = scmp.ne.s32.totalorder %s220, %s222
    %p229 = scmp.eq.s32.totalorder %s23, 1
    %p230 = por %p228, %p229
    %p231 = scmp.ne.s32.totalorder %s222, %s223
    %p232 = scmp.eq.s32.totalorder %s23, 0
    %p233 = por %p231, %p232
    %p234 = scmp.ne.s32.totalorder %s222, %s223
    %p235 = scmp.eq.s32.totalorder %s24, 1
    %p236 = por %p234, %p235
    %p238 = scmp.ne.s32.totalorder %s223, %s237
    %p239 = scmp.eq.s32.totalorder %s24, 0
    %p240 = por %p238, %p239
    %s242 = sadd.s32 %s241, 1
    %p245 = scmp.eq.s32.totalorder %s18, 1
    %p246 = scmp.ne.s32.totalorder %s241, %s243
    %p247 = scmp.eq.s32.totalorder %s18, 0
    %p248 = por %p246, %p247
    %p249 = scmp.ne.s32.totalorder %s241, %s243
    %p250 = scmp.eq.s32.totalorder %s23, 1
    %p251 = por %p249, %p250
    %p252 = scmp.ne.s32.totalorder %s243, %s244
    %p253 = scmp.eq.s32.totalorder %s23, 0
    %p254 = por %p252, %p253
    %p255 = scmp.ne.s32.totalorder %s243, %s244
    %p256 = scmp.eq.s32.totalorder %s24, 1
    %p257 = por %p255, %p256
    %p259 = scmp.ne.s32.totalorder %s244, %s258
    %p260 = scmp.eq.s32.totalorder %s24, 0
    %p261 = por %p259, %p260
    %s262 = ssub.s32 %s18, %s25
    %p263 = scmp.eq.s32.totalorder %s262, 0
    %s265 = sadd.s32 %s264, 1
    %s266 = scalar_select %p263, %s264, %s265
    %p269 = pneg %p263
    %p270 = scmp.eq.s32.totalorder %s18, 1
    %p271 = por %p269, %p270
    %p272 = scmp.ne.s32.totalorder %s264, %s267
    %p273 = scmp.eq.s32.totalorder %s18, 0
    %p274 = por %p272, %p273
    %p275 = scmp.ne.s32.totalorder %s264, %s267
    %p276 = scmp.eq.s32.totalorder %s23, 1
    %p277 = por %p275, %p276
    %p278 = scmp.ne.s32.totalorder %s267, %s268
    %p279 = scmp.eq.s32.totalorder %s23, 0
    %p280 = por %p278, %p279
    %p281 = scmp.ne.s32.totalorder %s267, %s268
    %p282 = scmp.eq.s32.totalorder %s24, 1
    %p283 = por %p281, %p282
    %p285 = scmp.ne.s32.totalorder %s268, %s284
    %p286 = scmp.eq.s32.totalorder %s24, 0
    %p287 = por %p285, %p286
    %p288 = scmp.le.s32.totalorder 1, %s18
    %p289 = scmp.lt.s32.totalorder %s18, 3
    %p290 = pnand %p288, %p289
    %p291 = pneg %p290
    // Predicated region
    $region9: #{mlp_pallas.1} parent=5 // pred_check
      _
    $region10: #{mlp_pallas.1} parent=5 // pred_check_branch
      %293 = sbr.rel (%p290) target = $region12
    $region11: #{mlp_pallas.1} parent=5 // pred_region
      %s294 = ssub.s32 %s18, 1
      // Predicated region
      $region13: #{mlp_pallas.1} parent=11 // pred_check
        %p295 = pneg %p65
      $region14: #{mlp_pallas.1} parent=11 // pred_check_branch
        %297 = sbr.rel (%p295) target = $region16
      $region15: #{mlp_pallas.1} parent=11 // pred_region
        _
      $region16: #{mlp_pallas.1} parent=11 // pred_fallthru
        _
      // Predicated region
      $region17: #{mlp_pallas.1} parent=11 // pred_check
        %p298 = pneg %p86
      $region18: #{mlp_pallas.1} parent=11 // pred_check_branch
        %300 = sbr.rel (%p298) target = $region20
      $region19: #{mlp_pallas.1} parent=11 // pred_region
        _
      $region20: #{mlp_pallas.1} parent=11 // pred_fallthru
        _
      // Predicated region
      $region21: #{mlp_pallas.1} parent=11 // pred_check
        %p301 = pneg %p107
      $region22: #{mlp_pallas.1} parent=11 // pred_check_branch
        %303 = sbr.rel (%p301) target = $region24
      $region23: #{mlp_pallas.1} parent=11 // pred_region
        _
      $region24: #{mlp_pallas.1} parent=11 // pred_fallthru
        _
      // Predicated region
      $region25: #{mlp_pallas.1} parent=11 // pred_check
        %p304 = pneg %p128
      $region26: #{mlp_pallas.1} parent=11 // pred_check_branch
        %306 = sbr.rel (%p304) target = $region28
      $region27: #{mlp_pallas.1} parent=11 // pred_region
        _
      $region28: #{mlp_pallas.1} parent=11 // pred_fallthru
        _
      // Predicated region
      $region29: #{mlp_pallas.1} parent=11 // pred_check
        %p307 = pneg %p149
      $region30: #{mlp_pallas.1} parent=11 // pred_check_branch
        %309 = sbr.rel (%p307) target = $region32
      $region31: #{mlp_pallas.1} parent=11 // pred_region
        _
      $region32: #{mlp_pallas.1} parent=11 // pred_fallthru
        _
      // Predicated region
      $region33: #{mlp_pallas.1} parent=11 // pred_check
        %p310 = pneg %p170
      $region34: #{mlp_pallas.1} parent=11 // pred_check_branch
        %312 = sbr.rel (%p310) target = $region36
      $region35: #{mlp_pallas.1} parent=11 // pred_region
        _
      $region36: #{mlp_pallas.1} parent=11 // pred_fallthru
        _
      // Predicated region
      $region37: #{mlp_pallas.1} parent=11 // pred_check
        %p313 = pneg %p191
      $region38: #{mlp_pallas.1} parent=11 // pred_check_branch
        %315 = sbr.rel (%p313) target = $region40
      $region39: #{mlp_pallas.1} parent=11 // pred_region
        _
      $region40: #{mlp_pallas.1} parent=11 // pred_fallthru
        _
      // Predicated region
      $region41: #{mlp_pallas.1} parent=11 // pred_check
        %p316 = pneg %p212
      $region42: #{mlp_pallas.1} parent=11 // pred_check_branch
        %318 = sbr.rel (%p316) target = $region44
      $region43: #{mlp_pallas.1} parent=11 // pred_region
        _
      $region44: #{mlp_pallas.1} parent=11 // pred_fallthru
        _
      // Predicated region
      $region45: #{mlp_pallas.1} parent=11 // pred_check
        %p319 = pneg %p233
      $region46: #{mlp_pallas.1} parent=11 // pred_check_branch
        %321 = sbr.rel (%p319) target = $region48
      $region47: #{mlp_pallas.1} parent=11 // pred_region
        _
      $region48: #{mlp_pallas.1} parent=11 // pred_fallthru
        _
      // Predicated region
      $region49: #{mlp_pallas.1} parent=11 // pred_check
        %p322 = pneg %p254
      $region50: #{mlp_pallas.1} parent=11 // pred_check_branch
        %324 = sbr.rel (%p322) target = $region52
      $region51: #{mlp_pallas.1} parent=11 // pred_region
        _
      $region52: #{mlp_pallas.1} parent=11 // pred_fallthru
        _
    $region12: #{mlp_pallas.1} parent=5 // pred_fallthru
      _
    %p325 = scmp.lt.s32.totalorder %s18, 2
    // Predicated region
    $region53: #{mlp_pallas.1} parent=5 // pred_check
      %p326 = pneg %p325
    $region54: #{mlp_pallas.1} parent=5 // pred_check_branch
      %328 = sbr.rel (%p326) target = $region56
    $region55: #{mlp_pallas.1} parent=5 // pred_region
      // Predicated region
      $region57: #{mlp_pallas.1} parent=55 // pred_check
        %p329 = pneg %p38
      $region58: #{mlp_pallas.1} parent=55 // pred_check_branch
        %331 = sbr.rel (%p329) target = $region60
      $region59: #{mlp_pallas.1} parent=55 // pred_region
        %s332 = smul.u32 32, %s18
        %p333 = scmp.lt.s32.totalorder %s332, 63
        %s334 = scalar_select %p333, %s332, 63
        %s335 = smul.addr %s334, 6
        %s336 = smul.addr %s335, 8
        %s337 = scalar_lea.vmem %s0, %s336
        %s338 = smul.u32 32, %s18
      $region60: #{mlp_pallas.1} parent=55 // pred_fallthru
        _
    $region56: #{mlp_pallas.1} parent=5 // pred_fallthru
      _
    %p339 = scmp.le.s32.totalorder 1, %s18
    %p340 = scmp.lt.s32.totalorder %s18, 3
    %p341 = pnand %p339, %p340
    %p342 = pneg %p341
    // Predicated region
    $region61: #{mlp_pallas.1} parent=5 // pred_check
      _
    $region62: #{mlp_pallas.1} parent=5 // pred_check_branch
      %344 = sbr.rel (%p341) target = $region64
    $region63: #{mlp_pallas.1} parent=5 // pred_region
      %s345 = ssub.s32 %s18, 1
      %s346 = smul.u32 32, %s23
      %p347 = scmp.lt.s32.totalorder %s346, 63
      %s348 = scalar_select %p347, %s346, 63
      %s349 = smul.addr %s348, 6
      %s350 = smul.addr %s349, 8
      %s351 = scalar_lea.vmem %s0, %s350
      %p352 = pneg %p44
      %p353 = pneg %p41
      %p354 = pneg %p65
      %p355 = pneg %p62
      %p356 = pneg %p86
      %p357 = pneg %p83
      %p358 = pneg %p107
      %p359 = pneg %p104
      %p360 = pneg %p128
      %p361 = pneg %p125
      %p362 = pneg %p149
      %p363 = pneg %p146
      %p364 = pneg %p170
      %p365 = pneg %p167
      %p366 = pneg %p191
      %p367 = pneg %p188
      %p368 = pneg %p212
      %p369 = pneg %p209
      %p370 = pneg %p233
      %p371 = pneg %p230
      %p372 = pneg %p254
      %p373 = pneg %p251
      %p374 = pneg %p280
      %p375 = pneg %p277
      %s376 = smul.u32 32, %s23
      %p377 = scmp.lt.s32.totalorder %s376, 63
      %s378 = scalar_select %p377, %s376, 63
      %s379 = smul.addr %s378, 8
      %s380 = scalar_lea.vmem %s11, %s379
      %s381 = smul.u32 32, %s23
      %p382 = scmp.lt.s32.totalorder %s381, 63
      %s383 = scalar_select %p382, %s381, 63
      %s384 = smul.addr %s383, 6
      %s385 = smul.addr %s384, 8
      %s386 = scalar_lea.vmem %s0, %s385
      %s387 = smul.u32 32, %s23
      %s388 = smul.u32 32, %s23
      %p389 = scmp.lt.s32.totalorder %s388, 63
      %s390 = scalar_select %p389, %s388, 63
      %s391 = smul.addr %s390, 8
      %s392 = scalar_lea.vmem %s11, %s391
      %s393 = smul.u32 32, %s23
      %v395 = vld [vmem:[%s386] sm:$0xff]
      %v396 = vld [vmem:[%s386 + $0x8] sm:$0xff]
      %v397 = vld [vmem:[%s386 + $0x10] sm:$0xff]
      %v398 = vld [vmem:[%s386 + $0x18] sm:$0xff]
      %v399 = vld [vmem:[%s386 + $0x20] sm:$0xff]
      %v400 = vld [vmem:[%s386 + $0x28] sm:$0xff]
      %v401 = vld [vmem:[%s386 + $0x30] sm:$0xff]
      %v402 = vld [vmem:[%s386 + $0x38] sm:$0xff]
      %v403 = vld [vmem:[%s386 + $0x40] sm:$0xff]
      %v404 = vld [vmem:[%s386 + $0x48] sm:$0xff]
      %v405 = vld [vmem:[%s386 + $0x50] sm:$0xff]
      %v406 = vld [vmem:[%s386 + $0x58] sm:$0xff]
      %v407 = vld [vmem:[%s386 + $0x60] sm:$0xff]
      %v408 = vld [vmem:[%s386 + $0x68] sm:$0xff]
      %v409 = vld [vmem:[%s386 + $0x70] sm:$0xff]
      %v410 = vld [vmem:[%s386 + $0x78] sm:$0xff]
      %v411 = vld [vmem:[%s386 + $0x80] sm:$0xff]
      %v412 = vld [vmem:[%s386 + $0x88] sm:$0xff]
      %v413 = vld [vmem:[%s386 + $0x90] sm:$0xff]
      %v414 = vld [vmem:[%s386 + $0x98] sm:$0xff]
      %v415 = vld [vmem:[%s386 + $0xa0] sm:$0xff]
      %v416 = vld [vmem:[%s386 + $0xa8] sm:$0xff]
      %v417 = vld [vmem:[%s386 + $0xb0] sm:$0xff]
      %v418 = vld [vmem:[%s386 + $0xb8] sm:$0xff]
      %v419 = vld [vmem:[%s386 + $0xc0] sm:$0xff]
      %v420 = vld [vmem:[%s386 + $0xc8] sm:$0xff]
      %v421 = vld [vmem:[%s386 + $0xd0] sm:$0xff]
      %v422 = vld [vmem:[%s386 + $0xd8] sm:$0xff]
      %v423 = vld [vmem:[%s386 + $0xe0] sm:$0xff]
      %v424 = vld [vmem:[%s386 + $0xe8] sm:$0xff]
      %v425 = vld [vmem:[%s386 + $0xf0] sm:$0xff]
      %v426 = vld [vmem:[%s386 + $0xf8] sm:$0xff]
      %v427 = vld [vmem:[%s386 + $0x100] sm:$0xff]
      %v428 = vld [vmem:[%s386 + $0x108] sm:$0xff]
      %v429 = vld [vmem:[%s386 + $0x110] sm:$0xff]
      %v430 = vld [vmem:[%s386 + $0x118] sm:$0xff]
      %v431 = vld [vmem:[%s386 + $0x120] sm:$0xff]
      %v432 = vld [vmem:[%s386 + $0x128] sm:$0xff]
      %v433 = vld [vmem:[%s386 + $0x130] sm:$0xff]
      %v434 = vld [vmem:[%s386 + $0x138] sm:$0xff]
      %v435 = vld [vmem:[%s386 + $0x140] sm:$0xff]
      %v436 = vld [vmem:[%s386 + $0x148] sm:$0xff]
      %v437 = vld [vmem:[%s386 + $0x150] sm:$0xff]
      %v438 = vld [vmem:[%s386 + $0x158] sm:$0xff]
      %v439 = vld [vmem:[%s386 + $0x160] sm:$0xff]
      %v440 = vld [vmem:[%s386 + $0x168] sm:$0xff]
      %v441 = vld [vmem:[%s386 + $0x170] sm:$0xff]
      %v442 = vld [vmem:[%s386 + $0x178] sm:$0xff]
      %v443 = vld [vmem:[%s386 + $0x180] sm:$0xff]
      %v444 = vld [vmem:[%s386 + $0x188] sm:$0xff]
      %v445 = vld [vmem:[%s386 + $0x190] sm:$0xff]
      %v446 = vld [vmem:[%s386 + $0x198] sm:$0xff]
      %v447 = vld [vmem:[%s386 + $0x1a0] sm:$0xff]
      %v448 = vld [vmem:[%s386 + $0x1a8] sm:$0xff]
      %v449 = vld [vmem:[%s386 + $0x1b0] sm:$0xff]
      %v450 = vld [vmem:[%s386 + $0x1b8] sm:$0xff]
      %v451 = vld [vmem:[%s386 + $0x1c0] sm:$0xff]
      %v452 = vld [vmem:[%s386 + $0x1c8] sm:$0xff]
      %v453 = vld [vmem:[%s386 + $0x1d0] sm:$0xff]
      %v454 = vld [vmem:[%s386 + $0x1d8] sm:$0xff]
      %v455 = vld [vmem:[%s386 + $0x1e0] sm:$0xff]
      %v456 = vld [vmem:[%s386 + $0x1e8] sm:$0xff]
      %v457 = vld [vmem:[%s386 + $0x1f0] sm:$0xff]
      %v458 = vld [vmem:[%s386 + $0x1f8] sm:$0xff]
      %v459 = vld [vmem:[%s386 + $0x200] sm:$0xff]
      %v460 = vld [vmem:[%s386 + $0x208] sm:$0xff]
      %v461 = vld [vmem:[%s386 + $0x210] sm:$0xff]
      %v462 = vld [vmem:[%s386 + $0x218] sm:$0xff]
      %v463 = vld [vmem:[%s386 + $0x220] sm:$0xff]
      %v464 = vld [vmem:[%s386 + $0x228] sm:$0xff]
      %v465 = vld [vmem:[%s386 + $0x230] sm:$0xff]
      %v466 = vld [vmem:[%s386 + $0x238] sm:$0xff]
      %v467 = vld [vmem:[%s386 + $0x240] sm:$0xff]
      %v468 = vld [vmem:[%s386 + $0x248] sm:$0xff]
      %v469 = vld [vmem:[%s386 + $0x250] sm:$0xff]
      %v470 = vld [vmem:[%s386 + $0x258] sm:$0xff]
      %v471 = vld [vmem:[%s386 + $0x260] sm:$0xff]
      %v472 = vld [vmem:[%s386 + $0x268] sm:$0xff]
      %v473 = vld [vmem:[%s386 + $0x270] sm:$0xff]
      %v474 = vld [vmem:[%s386 + $0x278] sm:$0xff]
      %v475 = vld [vmem:[%s386 + $0x280] sm:$0xff]
      %v476 = vld [vmem:[%s386 + $0x288] sm:$0xff]
      %v477 = vld [vmem:[%s386 + $0x290] sm:$0xff]
      %v478 = vld [vmem:[%s386 + $0x298] sm:$0xff]
      %v479 = vld [vmem:[%s386 + $0x2a0] sm:$0xff]
      %v480 = vld [vmem:[%s386 + $0x2a8] sm:$0xff]
      %v481 = vld [vmem:[%s386 + $0x2b0] sm:$0xff]
      %v482 = vld [vmem:[%s386 + $0x2b8] sm:$0xff]
      %v483 = vld [vmem:[%s386 + $0x2c0] sm:$0xff]
      %v484 = vld [vmem:[%s386 + $0x2c8] sm:$0xff]
      %v485 = vld [vmem:[%s386 + $0x2d0] sm:$0xff]
      %v486 = vld [vmem:[%s386 + $0x2d8] sm:$0xff]
      %v487 = vld [vmem:[%s386 + $0x2e0] sm:$0xff]
      %v488 = vld [vmem:[%s386 + $0x2e8] sm:$0xff]
      %v489 = vld [vmem:[%s386 + $0x2f0] sm:$0xff]
      %v490 = vld [vmem:[%s386 + $0x2f8] sm:$0xff]
      %v491 = vld [vmem:[%s386 + $0x300] sm:$0xff]
      %v492 = vld [vmem:[%s386 + $0x308] sm:$0xff]
      %v493 = vld [vmem:[%s386 + $0x310] sm:$0xff]
      %v494 = vld [vmem:[%s386 + $0x318] sm:$0xff]
      %v495 = vld [vmem:[%s386 + $0x320] sm:$0xff]
      %v496 = vld [vmem:[%s386 + $0x328] sm:$0xff]
      %v497 = vld [vmem:[%s386 + $0x330] sm:$0xff]
      %v498 = vld [vmem:[%s386 + $0x338] sm:$0xff]
      %v499 = vld [vmem:[%s386 + $0x340] sm:$0xff]
      %v500 = vld [vmem:[%s386 + $0x348] sm:$0xff]
      %v501 = vld [vmem:[%s386 + $0x350] sm:$0xff]
      %v502 = vld [vmem:[%s386 + $0x358] sm:$0xff]
      %v503 = vld [vmem:[%s386 + $0x360] sm:$0xff]
      %v504 = vld [vmem:[%s386 + $0x368] sm:$0xff]
      %v505 = vld [vmem:[%s386 + $0x370] sm:$0xff]
      %v506 = vld [vmem:[%s386 + $0x378] sm:$0xff]
      %v507 = vld [vmem:[%s386 + $0x380] sm:$0xff]
      %v508 = vld [vmem:[%s386 + $0x388] sm:$0xff]
      %v509 = vld [vmem:[%s386 + $0x390] sm:$0xff]
      %v510 = vld [vmem:[%s386 + $0x398] sm:$0xff]
      %v511 = vld [vmem:[%s386 + $0x3a0] sm:$0xff]
      %v512 = vld [vmem:[%s386 + $0x3a8] sm:$0xff]
      %v513 = vld [vmem:[%s386 + $0x3b0] sm:$0xff]
      %v514 = vld [vmem:[%s386 + $0x3b8] sm:$0xff]
      %v515 = vld [vmem:[%s386 + $0x3c0] sm:$0xff]
      %v516 = vld [vmem:[%s386 + $0x3c8] sm:$0xff]
      %v517 = vld [vmem:[%s386 + $0x3d0] sm:$0xff]
      %v518 = vld [vmem:[%s386 + $0x3d8] sm:$0xff]
      %v519 = vld [vmem:[%s386 + $0x3e0] sm:$0xff]
      %v520 = vld [vmem:[%s386 + $0x3e8] sm:$0xff]
      %v521 = vld [vmem:[%s386 + $0x3f0] sm:$0xff]
      %v522 = vld [vmem:[%s386 + $0x3f8] sm:$0xff]
      %v523 = vld [vmem:[%s386 + $0x400] sm:$0xff]
      %v524 = vld [vmem:[%s386 + $0x408] sm:$0xff]
      %v525 = vld [vmem:[%s386 + $0x410] sm:$0xff]
      %v526 = vld [vmem:[%s386 + $0x418] sm:$0xff]
      %v527 = vld [vmem:[%s386 + $0x420] sm:$0xff]
      %v528 = vld [vmem:[%s386 + $0x428] sm:$0xff]
      %v529 = vld [vmem:[%s386 + $0x430] sm:$0xff]
      %v530 = vld [vmem:[%s386 + $0x438] sm:$0xff]
      %v531 = vld [vmem:[%s386 + $0x440] sm:$0xff]
      %v532 = vld [vmem:[%s386 + $0x448] sm:$0xff]
      %v533 = vld [vmem:[%s386 + $0x450] sm:$0xff]
      %v534 = vld [vmem:[%s386 + $0x458] sm:$0xff]
      %v535 = vld [vmem:[%s386 + $0x460] sm:$0xff]
      %v536 = vld [vmem:[%s386 + $0x468] sm:$0xff]
      %v537 = vld [vmem:[%s386 + $0x470] sm:$0xff]
      %v538 = vld [vmem:[%s386 + $0x478] sm:$0xff]
      %v539 = vld [vmem:[%s386 + $0x480] sm:$0xff]
      %v540 = vld [vmem:[%s386 + $0x488] sm:$0xff]
      %v541 = vld [vmem:[%s386 + $0x490] sm:$0xff]
      %v542 = vld [vmem:[%s386 + $0x498] sm:$0xff]
      %v543 = vld [vmem:[%s386 + $0x4a0] sm:$0xff]
      %v544 = vld [vmem:[%s386 + $0x4a8] sm:$0xff]
      %v545 = vld [vmem:[%s386 + $0x4b0] sm:$0xff]
      %v546 = vld [vmem:[%s386 + $0x4b8] sm:$0xff]
      %v547 = vld [vmem:[%s386 + $0x4c0] sm:$0xff]
      %v548 = vld [vmem:[%s386 + $0x4c8] sm:$0xff]
      %v549 = vld [vmem:[%s386 + $0x4d0] sm:$0xff]
      %v550 = vld [vmem:[%s386 + $0x4d8] sm:$0xff]
      %v551 = vld [vmem:[%s386 + $0x4e0] sm:$0xff]
      %v552 = vld [vmem:[%s386 + $0x4e8] sm:$0xff]
      %v553 = vld [vmem:[%s386 + $0x4f0] sm:$0xff]
      %v554 = vld [vmem:[%s386 + $0x4f8] sm:$0xff]
      %v555 = vld [vmem:[%s386 + $0x500] sm:$0xff]
      %v556 = vld [vmem:[%s386 + $0x508] sm:$0xff]
      %v557 = vld [vmem:[%s386 + $0x510] sm:$0xff]
      %v558 = vld [vmem:[%s386 + $0x518] sm:$0xff]
      %v559 = vld [vmem:[%s386 + $0x520] sm:$0xff]
      %v560 = vld [vmem:[%s386 + $0x528] sm:$0xff]
      %v561 = vld [vmem:[%s386 + $0x530] sm:$0xff]
      %v562 = vld [vmem:[%s386 + $0x538] sm:$0xff]
      %v563 = vld [vmem:[%s386 + $0x540] sm:$0xff]
      %v564 = vld [vmem:[%s386 + $0x548] sm:$0xff]
      %v565 = vld [vmem:[%s386 + $0x550] sm:$0xff]
      %v566 = vld [vmem:[%s386 + $0x558] sm:$0xff]
      %v567 = vld [vmem:[%s386 + $0x560] sm:$0xff]
      %v568 = vld [vmem:[%s386 + $0x568] sm:$0xff]
      %v569 = vld [vmem:[%s386 + $0x570] sm:$0xff]
      %v570 = vld [vmem:[%s386 + $0x578] sm:$0xff]
      %v571 = vld [vmem:[%s386 + $0x580] sm:$0xff]
      %v572 = vld [vmem:[%s386 + $0x588] sm:$0xff]
      %v573 = vld [vmem:[%s386 + $0x590] sm:$0xff]
      %v574 = vld [vmem:[%s386 + $0x598] sm:$0xff]
      %v575 = vld [vmem:[%s386 + $0x5a0] sm:$0xff]
      %v576 = vld [vmem:[%s386 + $0x5a8] sm:$0xff]
      %v577 = vld [vmem:[%s386 + $0x5b0] sm:$0xff]
      %v578 = vld [vmem:[%s386 + $0x5b8] sm:$0xff]
      %v579 = vld [vmem:[%s386 + $0x5c0] sm:$0xff]
      %v580 = vld [vmem:[%s386 + $0x5c8] sm:$0xff]
      %v581 = vld [vmem:[%s386 + $0x5d0] sm:$0xff]
      %v582 = vld [vmem:[%s386 + $0x5d8] sm:$0xff]
      %v583 = vld [vmem:[%s386 + $0x5e0] sm:$0xff]
      %v584 = vld [vmem:[%s386 + $0x5e8] sm:$0xff]
      %v585 = vld [vmem:[%s386 + $0x5f0] sm:$0xff]
      %v586 = vld [vmem:[%s386 + $0x5f8] sm:$0xff]
      %v587 = vpack.c.bf16 %v401, %v395
      %v588 = vpack.c.bf16 %v402, %v396
      %v589 = vpack.c.bf16 %v403, %v397
      %v590 = vpack.c.bf16 %v404, %v398
      %v591 = vpack.c.bf16 %v405, %v399
      %v592 = vpack.c.bf16 %v406, %v400
      %v593 = vpack.c.bf16 %v413, %v407
      %v594 = vpack.c.bf16 %v414, %v408
      %v595 = vpack.c.bf16 %v415, %v409
      %v596 = vpack.c.bf16 %v416, %v410
      %v597 = vpack.c.bf16 %v417, %v411
      %v598 = vpack.c.bf16 %v418, %v412
      %v599 = vpack.c.bf16 %v425, %v419
      %v600 = vpack.c.bf16 %v426, %v420
      %v601 = vpack.c.bf16 %v427, %v421
      %v602 = vpack.c.bf16 %v428, %v422
      %v603 = vpack.c.bf16 %v429, %v423
      %v604 = vpack.c.bf16 %v430, %v424
      %v605 = vpack.c.bf16 %v437, %v431
      %v606 = vpack.c.bf16 %v438, %v432
      %v607 = vpack.c.bf16 %v439, %v433
      %v608 = vpack.c.bf16 %v440, %v434
      %v609 = vpack.c.bf16 %v441, %v435
      %v610 = vpack.c.bf16 %v442, %v436
      %v611 = vpack.c.bf16 %v449, %v443
      %v612 = vpack.c.bf16 %v450, %v444
      %v613 = vpack.c.bf16 %v451, %v445
      %v614 = vpack.c.bf16 %v452, %v446
      %v615 = vpack.c.bf16 %v453, %v447
      %v616 = vpack.c.bf16 %v454, %v448
      %v617 = vpack.c.bf16 %v461, %v455
      %v618 = vpack.c.bf16 %v462, %v456
      %v619 = vpack.c.bf16 %v463, %v457
      %v620 = vpack.c.bf16 %v464, %v458
      %v621 = vpack.c.bf16 %v465, %v459
      %v622 = vpack.c.bf16 %v466, %v460
      %v623 = vpack.c.bf16 %v473, %v467
      %v624 = vpack.c.bf16 %v474, %v468
      %v625 = vpack.c.bf16 %v475, %v469
      %v626 = vpack.c.bf16 %v476, %v470
      %v627 = vpack.c.bf16 %v477, %v471
      %v628 = vpack.c.bf16 %v478, %v472
      %v629 = vpack.c.bf16 %v485, %v479
      %v630 = vpack.c.bf16 %v486, %v480
      %v631 = vpack.c.bf16 %v487, %v481
      %v632 = vpack.c.bf16 %v488, %v482
      %v633 = vpack.c.bf16 %v489, %v483
      %v634 = vpack.c.bf16 %v490, %v484
      %v635 = vpack.c.bf16 %v497, %v491
      %v636 = vpack.c.bf16 %v498, %v492
      %v637 = vpack.c.bf16 %v499, %v493
      %v638 = vpack.c.bf16 %v500, %v494
      %v639 = vpack.c.bf16 %v501, %v495
      %v640 = vpack.c.bf16 %v502, %v496
      %v641 = vpack.c.bf16 %v509, %v503
      %v642 = vpack.c.bf16 %v510, %v504
      %v643 = vpack.c.bf16 %v511, %v505
      %v644 = vpack.c.bf16 %v512, %v506
      %v645 = vpack.c.bf16 %v513, %v507
      %v646 = vpack.c.bf16 %v514, %v508
      %v647 = vpack.c.bf16 %v521, %v515
      %v648 = vpack.c.bf16 %v522, %v516
      %v649 = vpack.c.bf16 %v523, %v517
      %v650 = vpack.c.bf16 %v524, %v518
      %v651 = vpack.c.bf16 %v525, %v519
      %v652 = vpack.c.bf16 %v526, %v520
      %v653 = vpack.c.bf16 %v533, %v527
      %v654 = vpack.c.bf16 %v534, %v528
      %v655 = vpack.c.bf16 %v535, %v529
      %v656 = vpack.c.bf16 %v536, %v530
      %v657 = vpack.c.bf16 %v537, %v531
      %v658 = vpack.c.bf16 %v538, %v532
      %v659 = vpack.c.bf16 %v545, %v539
      %v660 = vpack.c.bf16 %v546, %v540
      %v661 = vpack.c.bf16 %v547, %v541
      %v662 = vpack.c.bf16 %v548, %v542
      %v663 = vpack.c.bf16 %v549, %v543
      %v664 = vpack.c.bf16 %v550, %v544
      %v665 = vpack.c.bf16 %v557, %v551
      %v666 = vpack.c.bf16 %v558, %v552
      %v667 = vpack.c.bf16 %v559, %v553
      %v668 = vpack.c.bf16 %v560, %v554
      %v669 = vpack.c.bf16 %v561, %v555
      %v670 = vpack.c.bf16 %v562, %v556
      %v671 = vpack.c.bf16 %v569, %v563
      %v672 = vpack.c.bf16 %v570, %v564
      %v673 = vpack.c.bf16 %v571, %v565
      %v674 = vpack.c.bf16 %v572, %v566
      %v675 = vpack.c.bf16 %v573, %v567
      %v676 = vpack.c.bf16 %v574, %v568
      %v677 = vpack.c.bf16 %v581, %v575
      %v678 = vpack.c.bf16 %v582, %v576
      %v679 = vpack.c.bf16 %v583, %v577
      %v680 = vpack.c.bf16 %v584, %v578
      %v681 = vpack.c.bf16 %v585, %v579
      %v682 = vpack.c.bf16 %v586, %v580
      %v683 = vld [vmem:[%s1] sm:$0xff]
      %v684 = vld [vmem:[%s1 + $0x8] sm:$0xff]
      %v685 = vld [vmem:[%s1 + $0x10] sm:$0xff]
      %v686 = vld [vmem:[%s1 + $0x18] sm:$0xff]
      %v687 = vld [vmem:[%s1 + $0x20] sm:$0xff]
      %v688 = vld [vmem:[%s1 + $0x28] sm:$0xff]
      %v689 = vld [vmem:[%s1 + $0x30] sm:$0xff]
      %v690 = vld [vmem:[%s1 + $0x38] sm:$0xff]
      %v691 = vld [vmem:[%s1 + $0x40] sm:$0xff]
      %v692 = vld [vmem:[%s1 + $0x48] sm:$0xff]
      %v693 = vld [vmem:[%s1 + $0x50] sm:$0xff]
      %v694 = vld [vmem:[%s1 + $0x58] sm:$0xff]
      %v695 = vld [vmem:[%s1 + $0x60] sm:$0xff]
      %v696 = vld [vmem:[%s1 + $0x68] sm:$0xff]
      %v697 = vld [vmem:[%s1 + $0x70] sm:$0xff]
      %v698 = vld [vmem:[%s1 + $0x78] sm:$0xff]
      %v699 = vld [vmem:[%s1 + $0x80] sm:$0xff]
      %v700 = vld [vmem:[%s1 + $0x88] sm:$0xff]
      %v701 = vld [vmem:[%s1 + $0x90] sm:$0xff]
      %v702 = vld [vmem:[%s1 + $0x98] sm:$0xff]
      %v703 = vld [vmem:[%s1 + $0xa0] sm:$0xff]
      %v704 = vld [vmem:[%s1 + $0xa8] sm:$0xff]
      %v705 = vld [vmem:[%s1 + $0xb0] sm:$0xff]
      %v706 = vld [vmem:[%s1 + $0xb8] sm:$0xff]
      %v707 = vld [vmem:[%s1 + $0xc0] sm:$0xff]
      %v708 = vld [vmem:[%s1 + $0xc8] sm:$0xff]
      %v709 = vld [vmem:[%s1 + $0xd0] sm:$0xff]
      %v710 = vld [vmem:[%s1 + $0xd8] sm:$0xff]
      %v711 = vld [vmem:[%s1 + $0xe0] sm:$0xff]
      %v712 = vld [vmem:[%s1 + $0xe8] sm:$0xff]
      %v713 = vld [vmem:[%s1 + $0xf0] sm:$0xff]
      %v714 = vld [vmem:[%s1 + $0xf8] sm:$0xff]
      %v715 = vld [vmem:[%s1 + $0x100] sm:$0xff]
      %v716 = vld [vmem:[%s1 + $0x108] sm:$0xff]
      %v717 = vld [vmem:[%s1 + $0x110] sm:$0xff]
      %v718 = vld [vmem:[%s1 + $0x118] sm:$0xff]
      %v719 = vld [vmem:[%s1 + $0x120] sm:$0xff]
      %v720 = vld [vmem:[%s1 + $0x128] sm:$0xff]
      %v721 = vld [vmem:[%s1 + $0x130] sm:$0xff]
      %v722 = vld [vmem:[%s1 + $0x138] sm:$0xff]
      %v723 = vld [vmem:[%s1 + $0x140] sm:$0xff]
      %v724 = vld [vmem:[%s1 + $0x148] sm:$0xff]
      %v725 = vld [vmem:[%s1 + $0x150] sm:$0xff]
      %v726 = vld [vmem:[%s1 + $0x158] sm:$0xff]
      %v727 = vld [vmem:[%s1 + $0x160] sm:$0xff]
      %v728 = vld [vmem:[%s1 + $0x168] sm:$0xff]
      %v729 = vld [vmem:[%s1 + $0x170] sm:$0xff]
      %v730 = vld [vmem:[%s1 + $0x178] sm:$0xff]
      %v731 = vld [vmem:[%s1 + $0x180] sm:$0xff]
      %v732 = vld [vmem:[%s1 + $0x188] sm:$0xff]
      %v733 = vld [vmem:[%s1 + $0x190] sm:$0xff]
      %v734 = vld [vmem:[%s1 + $0x198] sm:$0xff]
      %v735 = vld [vmem:[%s1 + $0x1a0] sm:$0xff]
      %v736 = vld [vmem:[%s1 + $0x1a8] sm:$0xff]
      %v737 = vld [vmem:[%s1 + $0x1b0] sm:$0xff]
      %v738 = vld [vmem:[%s1 + $0x1b8] sm:$0xff]
      %v739 = vld [vmem:[%s1 + $0x1c0] sm:$0xff]
      %v740 = vld [vmem:[%s1 + $0x1c8] sm:$0xff]
      %v741 = vld [vmem:[%s1 + $0x1d0] sm:$0xff]
      %v742 = vld [vmem:[%s1 + $0x1d8] sm:$0xff]
      %v743 = vld [vmem:[%s1 + $0x1e0] sm:$0xff]
      %v744 = vld [vmem:[%s1 + $0x1e8] sm:$0xff]
      %v745 = vld [vmem:[%s1 + $0x1f0] sm:$0xff]
      %v746 = vld [vmem:[%s1 + $0x1f8] sm:$0xff]
      %v747 = vld [vmem:[%s1 + $0x200] sm:$0xff]
      %v748 = vld [vmem:[%s1 + $0x208] sm:$0xff]
      %v749 = vld [vmem:[%s1 + $0x210] sm:$0xff]
      %v750 = vld [vmem:[%s1 + $0x218] sm:$0xff]
      %v751 = vld [vmem:[%s1 + $0x220] sm:$0xff]
      %v752 = vld [vmem:[%s1 + $0x228] sm:$0xff]
      %v753 = vld [vmem:[%s1 + $0x230] sm:$0xff]
      %v754 = vld [vmem:[%s1 + $0x238] sm:$0xff]
      %v755 = vld [vmem:[%s1 + $0x240] sm:$0xff]
      %v756 = vld [vmem:[%s1 + $0x248] sm:$0xff]
      %v757 = vld [vmem:[%s1 + $0x250] sm:$0xff]
      %v758 = vld [vmem:[%s1 + $0x258] sm:$0xff]
      %v759 = vld [vmem:[%s1 + $0x260] sm:$0xff]
      %v760 = vld [vmem:[%s1 + $0x268] sm:$0xff]
      %v761 = vld [vmem:[%s1 + $0x270] sm:$0xff]
      %v762 = vld [vmem:[%s1 + $0x278] sm:$0xff]
      %v763 = vld [vmem:[%s1 + $0x280] sm:$0xff]
      %v764 = vld [vmem:[%s1 + $0x288] sm:$0xff]
      %v765 = vld [vmem:[%s1 + $0x290] sm:$0xff]
      %v766 = vld [vmem:[%s1 + $0x298] sm:$0xff]
      %v767 = vld [vmem:[%s1 + $0x2a0] sm:$0xff]
      %v768 = vld [vmem:[%s1 + $0x2a8] sm:$0xff]
      %v769 = vld [vmem:[%s1 + $0x2b0] sm:$0xff]
      %v770 = vld [vmem:[%s1 + $0x2b8] sm:$0xff]
      %v771 = vld [vmem:[%s1 + $0x2c0] sm:$0xff]
      %v772 = vld [vmem:[%s1 + $0x2c8] sm:$0xff]
      %v773 = vld [vmem:[%s1 + $0x2d0] sm:$0xff]
      %v774 = vld [vmem:[%s1 + $0x2d8] sm:$0xff]
      %v775 = vld [vmem:[%s1 + $0x2e0] sm:$0xff]
      %v776 = vld [vmem:[%s1 + $0x2e8] sm:$0xff]
      %v777 = vld [vmem:[%s1 + $0x2f0] sm:$0xff]
      %v778 = vld [vmem:[%s1 + $0x2f8] sm:$0xff]
      %v779 = vld [vmem:[%s2] sm:$0x3]
      %v781 = vlaneseq
      %v782 = vshrl.u32 %v781, 7
      %v783 = vsub.s32 0, %v782
      %v784 = vrot.slane %v779, %v783
      %v785 = vlaneseq
      %v786 = vshrl.u32 %v785, 7
      %v787 = vsub.s32 1, %v786
      %v788 = vrot.slane %v779, %v787
      %v887 = vunpack.c.l.b16 %v683
      %v888 = vunpack.c.h.b16 %v683
      %v889 = vunpack.c.l.b16 %v684
      %v890 = vunpack.c.h.b16 %v684
      %v891 = vunpack.c.l.b16 %v685
      %v892 = vunpack.c.h.b16 %v685
      %v893 = vunpack.c.l.b16 %v686
      %v894 = vunpack.c.h.b16 %v686
      %v895 = vunpack.c.l.b16 %v687
      %v896 = vunpack.c.h.b16 %v687
      %v897 = vunpack.c.l.b16 %v688
      %v898 = vunpack.c.h.b16 %v688
      %v899 = vunpack.c.l.b16 %v689
      %v900 = vunpack.c.h.b16 %v689
      %v901 = vunpack.c.l.b16 %v690
      %v902 = vunpack.c.h.b16 %v690
      %v903 = vunpack.c.l.b16 %v691
      %v904 = vunpack.c.h.b16 %v691
      %v905 = vunpack.c.l.b16 %v692
      %v906 = vunpack.c.h.b16 %v692
      %v907 = vunpack.c.l.b16 %v693
      %v908 = vunpack.c.h.b16 %v693
      %v909 = vunpack.c.l.b16 %v694
      %v910 = vunpack.c.h.b16 %v694
      %v911 = vunpack.c.l.b16 %v695
      %v912 = vunpack.c.h.b16 %v695
      %v913 = vunpack.c.l.b16 %v696
      %v914 = vunpack.c.h.b16 %v696
      %v915 = vunpack.c.l.b16 %v697
      %v916 = vunpack.c.h.b16 %v697
      %v917 = vunpack.c.l.b16 %v698
      %v918 = vunpack.c.h.b16 %v698
      %v919 = vunpack.c.l.b16 %v699
      %v920 = vunpack.c.h.b16 %v699
      %v921 = vunpack.c.l.b16 %v700
      %v922 = vunpack.c.h.b16 %v700
      %v923 = vunpack.c.l.b16 %v701
      %v924 = vunpack.c.h.b16 %v701
      %v925 = vunpack.c.l.b16 %v702
      %v926 = vunpack.c.h.b16 %v702
      %v927 = vunpack.c.l.b16 %v703
      %v928 = vunpack.c.h.b16 %v703
      %v929 = vunpack.c.l.b16 %v704
      %v930 = vunpack.c.h.b16 %v704
      %v931 = vunpack.c.l.b16 %v705
      %v932 = vunpack.c.h.b16 %v705
      %v933 = vunpack.c.l.b16 %v706
      %v934 = vunpack.c.h.b16 %v706
      %v935 = vunpack.c.l.b16 %v707
      %v936 = vunpack.c.h.b16 %v707
      %v937 = vunpack.c.l.b16 %v708
      %v938 = vunpack.c.h.b16 %v708
      %v939 = vunpack.c.l.b16 %v709
      %v940 = vunpack.c.h.b16 %v709
      %v941 = vunpack.c.l.b16 %v710
      %v942 = vunpack.c.h.b16 %v710
      %v943 = vunpack.c.l.b16 %v711
      %v944 = vunpack.c.h.b16 %v711
      %v945 = vunpack.c.l.b16 %v712
      %v946 = vunpack.c.h.b16 %v712
      %v947 = vunpack.c.l.b16 %v713
      %v948 = vunpack.c.h.b16 %v713
      %v949 = vunpack.c.l.b16 %v714
      %v950 = vunpack.c.h.b16 %v714
      %v951 = vunpack.c.l.b16 %v715
      %v952 = vunpack.c.h.b16 %v715
      %v953 = vunpack.c.l.b16 %v716
      %v954 = vunpack.c.h.b16 %v716
      %v955 = vunpack.c.l.b16 %v717
      %v956 = vunpack.c.h.b16 %v717
      %v957 = vunpack.c.l.b16 %v718
      %v958 = vunpack.c.h.b16 %v718
      %v959 = vunpack.c.l.b16 %v719
      %v960 = vunpack.c.h.b16 %v719
      %v961 = vunpack.c.l.b16 %v720
      %v962 = vunpack.c.h.b16 %v720
      %v963 = vunpack.c.l.b16 %v721
      %v964 = vunpack.c.h.b16 %v721
      %v965 = vunpack.c.l.b16 %v722
      %v966 = vunpack.c.h.b16 %v722
      %v967 = vunpack.c.l.b16 %v723
      %v968 = vunpack.c.h.b16 %v723
      %v969 = vunpack.c.l.b16 %v724
      %v970 = vunpack.c.h.b16 %v724
      %v971 = vunpack.c.l.b16 %v725
      %v972 = vunpack.c.h.b16 %v725
      %v973 = vunpack.c.l.b16 %v726
      %v974 = vunpack.c.h.b16 %v726
      %v975 = vunpack.c.l.b16 %v727
      %v976 = vunpack.c.h.b16 %v727
      %v977 = vunpack.c.l.b16 %v728
      %v978 = vunpack.c.h.b16 %v728
      %v979 = vunpack.c.l.b16 %v729
      %v980 = vunpack.c.h.b16 %v729
      %v981 = vunpack.c.l.b16 %v730
      %v982 = vunpack.c.h.b16 %v730
      %v983 = vunpack.c.l.b16 %v731
      %v984 = vunpack.c.h.b16 %v731
      %v985 = vunpack.c.l.b16 %v732
      %v986 = vunpack.c.h.b16 %v732
      %v987 = vunpack.c.l.b16 %v733
      %v988 = vunpack.c.h.b16 %v733
      %v989 = vunpack.c.l.b16 %v734
      %v990 = vunpack.c.h.b16 %v734
      %v991 = vunpack.c.l.b16 %v735
      %v992 = vunpack.c.h.b16 %v735
      %v993 = vunpack.c.l.b16 %v736
      %v994 = vunpack.c.h.b16 %v736
      %v995 = vunpack.c.l.b16 %v737
      %v996 = vunpack.c.h.b16 %v737
      %v997 = vunpack.c.l.b16 %v738
      %v998 = vunpack.c.h.b16 %v738
      %v999 = vunpack.c.l.b16 %v739
      %v1000 = vunpack.c.h.b16 %v739
      %v1001 = vunpack.c.l.b16 %v740
      %v1002 = vunpack.c.h.b16 %v740
      %v1003 = vunpack.c.l.b16 %v741
      %v1004 = vunpack.c.h.b16 %v741
      %v1005 = vunpack.c.l.b16 %v742
      %v1006 = vunpack.c.h.b16 %v742
      %v1007 = vunpack.c.l.b16 %v743
      %v1008 = vunpack.c.h.b16 %v743
      %v1009 = vunpack.c.l.b16 %v744
      %v1010 = vunpack.c.h.b16 %v744
      %v1011 = vunpack.c.l.b16 %v745
      %v1012 = vunpack.c.h.b16 %v745
      %v1013 = vunpack.c.l.b16 %v746
      %v1014 = vunpack.c.h.b16 %v746
      %v1015 = vunpack.c.l.b16 %v747
      %v1016 = vunpack.c.h.b16 %v747
      %v1017 = vunpack.c.l.b16 %v748
      %v1018 = vunpack.c.h.b16 %v748
      %v1019 = vunpack.c.l.b16 %v749
      %v1020 = vunpack.c.h.b16 %v749
      %v1021 = vunpack.c.l.b16 %v750
      %v1022 = vunpack.c.h.b16 %v750
      %v1023 = vunpack.c.l.b16 %v751
      %v1024 = vunpack.c.h.b16 %v751
      %v1025 = vunpack.c.l.b16 %v752
      %v1026 = vunpack.c.h.b16 %v752
      %v1027 = vunpack.c.l.b16 %v753
      %v1028 = vunpack.c.h.b16 %v753
      %v1029 = vunpack.c.l.b16 %v754
      %v1030 = vunpack.c.h.b16 %v754
      %v1031 = vunpack.c.l.b16 %v755
      %v1032 = vunpack.c.h.b16 %v755
      %v1033 = vunpack.c.l.b16 %v756
      %v1034 = vunpack.c.h.b16 %v756
      %v1035 = vunpack.c.l.b16 %v757
      %v1036 = vunpack.c.h.b16 %v757
      %v1037 = vunpack.c.l.b16 %v758
      %v1038 = vunpack.c.h.b16 %v758
      %v1039 = vunpack.c.l.b16 %v759
      %v1040 = vunpack.c.h.b16 %v759
      %v1041 = vunpack.c.l.b16 %v760
      %v1042 = vunpack.c.h.b16 %v760
      %v1043 = vunpack.c.l.b16 %v761
      %v1044 = vunpack.c.h.b16 %v761
      %v1045 = vunpack.c.l.b16 %v762
      %v1046 = vunpack.c.h.b16 %v762
      %v1047 = vunpack.c.l.b16 %v763
      %v1048 = vunpack.c.h.b16 %v763
      %v1049 = vunpack.c.l.b16 %v764
      %v1050 = vunpack.c.h.b16 %v764
      %v1051 = vunpack.c.l.b16 %v765
      %v1052 = vunpack.c.h.b16 %v765
      %v1053 = vunpack.c.l.b16 %v766
      %v1054 = vunpack.c.h.b16 %v766
      %v1055 = vunpack.c.l.b16 %v767
      %v1056 = vunpack.c.h.b16 %v767
      %v1057 = vunpack.c.l.b16 %v768
      %v1058 = vunpack.c.h.b16 %v768
      %v1059 = vunpack.c.l.b16 %v769
      %v1060 = vunpack.c.h.b16 %v769
      %v1061 = vunpack.c.l.b16 %v770
      %v1062 = vunpack.c.h.b16 %v770
      %v1063 = vunpack.c.l.b16 %v771
      %v1064 = vunpack.c.h.b16 %v771
      %v1065 = vunpack.c.l.b16 %v772
      %v1066 = vunpack.c.h.b16 %v772
      %v1067 = vunpack.c.l.b16 %v773
      %v1068 = vunpack.c.h.b16 %v773
      %v1069 = vunpack.c.l.b16 %v774
      %v1070 = vunpack.c.h.b16 %v774
      %v1071 = vunpack.c.l.b16 %v775
      %v1072 = vunpack.c.h.b16 %v775
      %v1073 = vunpack.c.l.b16 %v776
      %v1074 = vunpack.c.h.b16 %v776
      %v1075 = vunpack.c.l.b16 %v777
      %v1076 = vunpack.c.h.b16 %v777
      %v1077 = vunpack.c.l.b16 %v778
      %v1078 = vunpack.c.h.b16 %v778
      %v1079 = vpack.c.b16 %v889, %v887
      %v1080 = vpack.c.b16 %v890, %v888
      %v1081 = vpack.c.b16 %v893, %v891
      %v1082 = vpack.c.b16 %v894, %v892
      %v1083 = vpack.c.b16 %v897, %v895
      %v1084 = vpack.c.b16 %v898, %v896
      %v1085 = vpack.c.b16 %v901, %v899
      %v1086 = vpack.c.b16 %v902, %v900
      %v1087 = vpack.c.b16 %v905, %v903
      %v1088 = vpack.c.b16 %v906, %v904
      %v1089 = vpack.c.b16 %v909, %v907
      %v1090 = vpack.c.b16 %v910, %v908
      %v1091 = vpack.c.b16 %v913, %v911
      %v1092 = vpack.c.b16 %v914, %v912
      %v1093 = vpack.c.b16 %v917, %v915
      %v1094 = vpack.c.b16 %v918, %v916
      %v1095 = vpack.c.b16 %v921, %v919
      %v1096 = vpack.c.b16 %v922, %v920
      %v1097 = vpack.c.b16 %v925, %v923
      %v1098 = vpack.c.b16 %v926, %v924
      %v1099 = vpack.c.b16 %v929, %v927
      %v1100 = vpack.c.b16 %v930, %v928
      %v1101 = vpack.c.b16 %v933, %v931
      %v1102 = vpack.c.b16 %v934, %v932
      %v1103 = vpack.c.b16 %v937, %v935
      %v1104 = vpack.c.b16 %v938, %v936
      %v1105 = vpack.c.b16 %v941, %v939
      %v1106 = vpack.c.b16 %v942, %v940
      %v1107 = vpack.c.b16 %v945, %v943
      %v1108 = vpack.c.b16 %v946, %v944
      %v1109 = vpack.c.b16 %v949, %v947
      %v1110 = vpack.c.b16 %v950, %v948
      %v1111 = vpack.c.b16 %v953, %v951
      %v1112 = vpack.c.b16 %v954, %v952
      %v1113 = vpack.c.b16 %v957, %v955
      %v1114 = vpack.c.b16 %v958, %v956
      %v1115 = vpack.c.b16 %v961, %v959
      %v1116 = vpack.c.b16 %v962, %v960
      %v1117 = vpack.c.b16 %v965, %v963
      %v1118 = vpack.c.b16 %v966, %v964
      %v1119 = vpack.c.b16 %v969, %v967
      %v1120 = vpack.c.b16 %v970, %v968
      %v1121 = vpack.c.b16 %v973, %v971
      %v1122 = vpack.c.b16 %v974, %v972
      %v1123 = vpack.c.b16 %v977, %v975
      %v1124 = vpack.c.b16 %v978, %v976
      %v1125 = vpack.c.b16 %v981, %v979
      %v1126 = vpack.c.b16 %v982, %v980
      %v1127 = vpack.c.b16 %v985, %v983
      %v1128 = vpack.c.b16 %v986, %v984
      %v1129 = vpack.c.b16 %v989, %v987
      %v1130 = vpack.c.b16 %v990, %v988
      %v1131 = vpack.c.b16 %v993, %v991
      %v1132 = vpack.c.b16 %v994, %v992
      %v1133 = vpack.c.b16 %v997, %v995
      %v1134 = vpack.c.b16 %v998, %v996
      %v1135 = vpack.c.b16 %v1001, %v999
      %v1136 = vpack.c.b16 %v1002, %v1000
      %v1137 = vpack.c.b16 %v1005, %v1003
      %v1138 = vpack.c.b16 %v1006, %v1004
      %v1139 = vpack.c.b16 %v1009, %v1007
      %v1140 = vpack.c.b16 %v1010, %v1008
      %v1141 = vpack.c.b16 %v1013, %v1011
      %v1142 = vpack.c.b16 %v1014, %v1012
      %v1143 = vpack.c.b16 %v1017, %v1015
      %v1144 = vpack.c.b16 %v1018, %v1016
      %v1145 = vpack.c.b16 %v1021, %v1019
      %v1146 = vpack.c.b16 %v1022, %v1020
      %v1147 = vpack.c.b16 %v1025, %v1023
      %v1148 = vpack.c.b16 %v1026, %v1024
      %v1149 = vpack.c.b16 %v1029, %v1027
      %v1150 = vpack.c.b16 %v1030, %v1028
      %v1151 = vpack.c.b16 %v1033, %v1031
      %v1152 = vpack.c.b16 %v1034, %v1032
      %v1153 = vpack.c.b16 %v1037, %v1035
      %v1154 = vpack.c.b16 %v1038, %v1036
      %v1155 = vpack.c.b16 %v1041, %v1039
      %v1156 = vpack.c.b16 %v1042, %v1040
      %v1157 = vpack.c.b16 %v1045, %v1043
      %v1158 = vpack.c.b16 %v1046, %v1044
      %v1159 = vpack.c.b16 %v1049, %v1047
      %v1160 = vpack.c.b16 %v1050, %v1048
      %v1161 = vpack.c.b16 %v1053, %v1051
      %v1162 = vpack.c.b16 %v1054, %v1052
      %v1163 = vpack.c.b16 %v1057, %v1055
      %v1164 = vpack.c.b16 %v1058, %v1056
      %v1165 = vpack.c.b16 %v1061, %v1059
      %v1166 = vpack.c.b16 %v1062, %v1060
      %v1167 = vpack.c.b16 %v1065, %v1063
      %v1168 = vpack.c.b16 %v1066, %v1064
      %v1169 = vpack.c.b16 %v1069, %v1067
      %v1170 = vpack.c.b16 %v1070, %v1068
      %v1171 = vpack.c.b16 %v1073, %v1071
      %v1172 = vpack.c.b16 %v1074, %v1072
      %v1173 = vpack.c.b16 %v1077, %v1075
      %v1174 = vpack.c.b16 %v1078, %v1076
      %1271 = vmatprep.subr.bf16.mxu0 %v1080
      %1272 = vmatpush1.bf16.msra.mxu0 %v1079
      %1273 = vmatprep.subr.bf16.mxu0 %v1082
      %1274 = vmatpush1.bf16.msra.mxu0 %v1081
      %1275 = vmatprep.subr.bf16.mxu0 %v1084
      %1276 = vmatpush1.bf16.msra.mxu0 %v1083
      %1277 = vmatprep.subr.bf16.mxu0 %v1086
      %1278 = vmatpush1.bf16.msra.mxu0 %v1085
      %1279 = vmatprep.subr.bf16.mxu0 %v1088
      %1280 = vmatpush1.bf16.msra.mxu0 %v1087
      %1281 = vmatprep.subr.bf16.mxu0 %v1090
      %1282 = vmatpush1.bf16.msra.mxu0 %v1089
      %1283 = vmatprep.subr.bf16.mxu0 %v1092
      %1284 = vmatpush1.bf16.msra.mxu0 %v1091
      %1285 = vmatprep.subr.bf16.mxu0 %v1094
      %1286 = vmatpush1.bf16.msra.mxu0 %v1093
      %1287 = vmatprep.subr.bf16.mxu0 %v1096
      %1288 = vmatpush1.bf16.msra.mxu0 %v1095
      %1289 = vmatprep.subr.bf16.mxu0 %v1098
      %1290 = vmatpush1.bf16.msra.mxu0 %v1097
      %1291 = vmatprep.subr.bf16.mxu0 %v1100
      %1292 = vmatpush1.bf16.msra.mxu0 %v1099
      %1293 = vmatprep.subr.bf16.mxu0 %v1102
      %1294 = vmatpush1.bf16.msra.mxu0 %v1101
      %1295 = vmatprep.subr.bf16.mxu0 %v1104
      %1296 = vmatpush1.bf16.msra.mxu0 %v1103
      %1297 = vmatprep.subr.bf16.mxu0 %v1106
      %1298 = vmatpush1.bf16.msra.mxu0 %v1105
      %1299 = vmatprep.subr.bf16.mxu0 %v1108
      %1300 = vmatpush1.bf16.msra.mxu0 %v1107
      %1301 = vmatprep.subr.bf16.mxu0 %v1110
      %1302 = vmatpush1.bf16.msra.mxu0 %v1109
      %1303 = vmatprep.mubr.bf16.mxu0 %v588
      %1304 = vmatmul.mubr.bf16.gmra.mrb[0].mxu0 %v587
      %v1305 = vpop.f32.mrb[0].mxu0
      %v1306 = vadd.f32 %v784, %v1305
      %v1307 = vpop.f32.mrb[0].mxu0
      %v1308 = vadd.f32 %v788, %v1307
      %v1309 = vpop.f32.mrb[0].mxu0
      %v1310 = vadd.f32 %v784, %v1309
      %v1311 = vpop.f32.mrb[0].mxu0
      %v1312 = vadd.f32 %v788, %v1311
      %1313 = vmatprep.mubr.bf16.mxu0 %v594
      %1314 = vmatmul.mubr.bf16.gmra.mrb[0].mxu0 %v593
      %v1315 = vpop.f32.mrb[0].mxu0
      %v1316 = vadd.f32 %v784, %v1315
      %v1317 = vpop.f32.mrb[0].mxu0
      %v1318 = vadd.f32 %v788, %v1317
      %v1319 = vpop.f32.mrb[0].mxu0
      %v1320 = vadd.f32 %v784, %v1319
      %v1321 = vpop.f32.mrb[0].mxu0
      %v1322 = vadd.f32 %v788, %v1321
      %1323 = vmatprep.mubr.bf16.mxu0 %v600
      %1324 = vmatmul.mubr.bf16.gmra.mrb[0].mxu0 %v599
      %v1325 = vpop.f32.mrb[0].mxu0
      %v1326 = vadd.f32 %v784, %v1325
      %v1327 = vpop.f32.mrb[0].mxu0
      %v1328 = vadd.f32 %v788, %v1327
      %v1329 = vpop.f32.mrb[0].mxu0
      %v1330 = vadd.f32 %v784, %v1329
      %v1331 = vpop.f32.mrb[0].mxu0
      %v1332 = vadd.f32 %v788, %v1331
      %1333 = vmatprep.mubr.bf16.mxu0 %v606
      %1334 = vmatmul.mubr.bf16.gmra.mrb[0].mxu0 %v605
      %v1335 = vpop.f32.mrb[0].mxu0
      %v1336 = vadd.f32 %v784, %v1335
      %v1337 = vpop.f32.mrb[0].mxu0
      %v1338 = vadd.f32 %v788, %v1337
      %v1339 = vpop.f32.mrb[0].mxu0
      %v1340 = vadd.f32 %v784, %v1339
      %v1341 = vpop.f32.mrb[0].mxu0
      %v1342 = vadd.f32 %v788, %v1341
      %1343 = vmatprep.mubr.bf16.mxu0 %v612
      %1344 = vmatmul.mubr.bf16.gmra.mrb[0].mxu0 %v611
      %v1345 = vpop.f32.mrb[0].mxu0
      %v1346 = vadd.f32 %v784, %v1345
      %v1347 = vpop.f32.mrb[0].mxu0
      %v1348 = vadd.f32 %v788, %v1347
      %v1349 = vpop.f32.mrb[0].mxu0
      %v1350 = vadd.f32 %v784, %v1349
      %v1351 = vpop.f32.mrb[0].mxu0
      %v1352 = vadd.f32 %v788, %v1351
      %1353 = vmatprep.mubr.bf16.mxu0 %v618
      %1354 = vmatmul.mubr.bf16.gmra.mrb[0].mxu0 %v617
      %v1355 = vpop.f32.mrb[0].mxu0
      %v1356 = vadd.f32 %v784, %v1355
      %v1357 = vpop.f32.mrb[0].mxu0
      %v1358 = vadd.f32 %v788, %v1357
      %v1359 = vpop.f32.mrb[0].mxu0
      %v1360 = vadd.f32 %v784, %v1359
      %v1361 = vpop.f32.mrb[0].mxu0
      %v1362 = vadd.f32 %v788, %v1361
      %1363 = vmatprep.mubr.bf16.mxu0 %v624
      %1364 = vmatmul.mubr.bf16.gmra.mrb[0].mxu0 %v623
      %v1365 = vpop.f32.mrb[0].mxu0
      %v1366 = vadd.f32 %v784, %v1365
      %v1367 = vpop.f32.mrb[0].mxu0
      %v1368 = vadd.f32 %v788, %v1367
      %v1369 = vpop.f32.mrb[0].mxu0
      %v1370 = vadd.f32 %v784, %v1369
      %v1371 = vpop.f32.mrb[0].mxu0
      %v1372 = vadd.f32 %v788, %v1371
      %1373 = vmatprep.mubr.bf16.mxu0 %v630
      %1374 = vmatmul.mubr.bf16.gmra.mrb[0].mxu0 %v629
      %v1375 = vpop.f32.mrb[0].mxu0
      %v1376 = vadd.f32 %v784, %v1375
      %v1377 = vpop.f32.mrb[0].mxu0
      %v1378 = vadd.f32 %v788, %v1377
      %v1379 = vpop.f32.mrb[0].mxu0
      %v1380 = vadd.f32 %v784, %v1379
      %v1381 = vpop.f32.mrb[0].mxu0
      %v1382 = vadd.f32 %v788, %v1381
      %1383 = vmatprep.mubr.bf16.mxu0 %v636
      %1384 = vmatmul.mubr.bf16.gmra.mrb[0].mxu0 %v635
      %v1385 = vpop.f32.mrb[0].mxu0
      %v1386 = vadd.f32 %v784, %v1385
      %v1387 = vpop.f32.mrb[0].mxu0
      %v1388 = vadd.f32 %v788, %v1387
      %v1389 = vpop.f32.mrb[0].mxu0
      %v1390 = vadd.f32 %v784, %v1389
      %v1391 = vpop.f32.mrb[0].mxu0
      %v1392 = vadd.f32 %v788, %v1391
      %1393 = vmatprep.mubr.bf16.mxu0 %v642
      %1394 = vmatmul.mubr.bf16.gmra.mrb[0].mxu0 %v641
      %v1395 = vpop.f32.mrb[0].mxu0
      %v1396 = vadd.f32 %v784, %v1395
      %v1397 = vpop.f32.mrb[0].mxu0
      %v1398 = vadd.f32 %v788, %v1397
      %v1399 = vpop.f32.mrb[0].mxu0
      %v1400 = vadd.f32 %v784, %v1399
      %v1401 = vpop.f32.mrb[0].mxu0
      %v1402 = vadd.f32 %v788, %v1401
      %1403 = vmatprep.mubr.bf16.mxu0 %v648
      %1404 = vmatmul.mubr.bf16.gmra.mrb[0].mxu0 %v647
      %v1405 = vpop.f32.mrb[0].mxu0
      %v1406 = vadd.f32 %v784, %v1405
      %v1407 = vpop.f32.mrb[0].mxu0
      %v1408 = vadd.f32 %v788, %v1407
      %v1409 = vpop.f32.mrb[0].mxu0
      %v1410 = vadd.f32 %v784, %v1409
      %v1411 = vpop.f32.mrb[0].mxu0
      %v1412 = vadd.f32 %v788, %v1411
      %1413 = vmatprep.mubr.bf16.mxu0 %v654
      %1414 = vmatmul.mubr.bf16.gmra.mrb[0].mxu0 %v653
      %v1415 = vpop.f32.mrb[0].mxu0
      %v1416 = vadd.f32 %v784, %v1415
      %v1417 = vpop.f32.mrb[0].mxu0
      %v1418 = vadd.f32 %v788, %v1417
      %v1419 = vpop.f32.mrb[0].mxu0
      %v1420 = vadd.f32 %v784, %v1419
      %v1421 = vpop.f32.mrb[0].mxu0
      %v1422 = vadd.f32 %v788, %v1421
      %1423 = vmatprep.mubr.bf16.mxu0 %v660
      %1424 = vmatmul.mubr.bf16.gmra.mrb[0].mxu0 %v659
      %v1425 = vpop.f32.mrb[0].mxu0
      %v1426 = vadd.f32 %v784, %v1425
      %v1427 = vpop.f32.mrb[0].mxu0
      %v1428 = vadd.f32 %v788, %v1427
      %v1429 = vpop.f32.mrb[0].mxu0
      %v1430 = vadd.f32 %v784, %v1429
      %v1431 = vpop.f32.mrb[0].mxu0
      %v1432 = vadd.f32 %v788, %v1431
      %1433 = vmatprep.mubr.bf16.mxu0 %v666
      %1434 = vmatmul.mubr.bf16.gmra.mrb[0].mxu0 %v665
      %v1435 = vpop.f32.mrb[0].mxu0
      %v1436 = vadd.f32 %v784, %v1435
      %v1437 = vpop.f32.mrb[0].mxu0
      %v1438 = vadd.f32 %v788, %v1437
      %v1439 = vpop.f32.mrb[0].mxu0
      %v1440 = vadd.f32 %v784, %v1439
      %v1441 = vpop.f32.mrb[0].mxu0
      %v1442 = vadd.f32 %v788, %v1441
      %1443 = vmatprep.mubr.bf16.mxu0 %v672
      %1444 = vmatmul.mubr.bf16.gmra.mrb[0].mxu0 %v671
      %v1445 = vpop.f32.mrb[0].mxu0
      %v1446 = vadd.f32 %v784, %v1445
      %v1447 = vpop.f32.mrb[0].mxu0
      %v1448 = vadd.f32 %v788, %v1447
      %v1449 = vpop.f32.mrb[0].mxu0
      %v1450 = vadd.f32 %v784, %v1449
      %v1451 = vpop.f32.mrb[0].mxu0
      %v1452 = vadd.f32 %v788, %v1451
      %1453 = vmatprep.mubr.bf16.mxu0 %v678
      %1454 = vmatmul.mubr.bf16.gmra.mrb[0].mxu0 %v677
      %v1455 = vpop.f32.mrb[0].mxu0
      %v1456 = vadd.f32 %v784, %v1455
      %v1457 = vpop.f32.mrb[0].mxu0
      %v1458 = vadd.f32 %v788, %v1457
      %v1459 = vpop.f32.mrb[0].mxu0
      %v1460 = vadd.f32 %v784, %v1459
      %v1461 = vpop.f32.mrb[0].mxu0
      %v1462 = vadd.f32 %v788, %v1461
      %1463 = vdwg.mxu0
      %1464 = vmatprep.subr.bf16.mxu0 %v1112
      %1465 = vmatpush1.bf16.msra.mxu0 %v1111
      %1466 = vmatprep.subr.bf16.mxu0 %v1114
      %1467 = vmatpush1.bf16.msra.mxu0 %v1113
      %1468 = vmatprep.subr.bf16.mxu0 %v1116
      %1469 = vmatpush1.bf16.msra.mxu0 %v1115
      %1470 = vmatprep.subr.bf16.mxu0 %v1118
      %1471 = vmatpush1.bf16.msra.mxu0 %v1117
      %1472 = vmatprep.subr.bf16.mxu0 %v1120
      %1473 = vmatpush1.bf16.msra.mxu0 %v1119
      %1474 = vmatprep.subr.bf16.mxu0 %v1122
      %1475 = vmatpush1.bf16.msra.mxu0 %v1121
      %1476 = vmatprep.subr.bf16.mxu0 %v1124
      %1477 = vmatpush1.bf16.msra.mxu0 %v1123
      %1478 = vmatprep.subr.bf16.mxu0 %v1126
      %1479 = vmatpush1.bf16.msra.mxu0 %v1125
      %1480 = vmatprep.subr.bf16.mxu0 %v1128
      %1481 = vmatpush1.bf16.msra.mxu0 %v1127
      %1482 = vmatprep.subr.bf16.mxu0 %v1130
      %1483 = vmatpush1.bf16.msra.mxu0 %v1129
      %1484 = vmatprep.subr.bf16.mxu0 %v1132
      %1485 = vmatpush1.bf16.msra.mxu0 %v1131
      %1486 = vmatprep.subr.bf16.mxu0 %v1134
      %1487 = vmatpush1.bf16.msra.mxu0 %v1133
      %1488 = vmatprep.subr.bf16.mxu0 %v1136
      %1489 = vmatpush1.bf16.msra.mxu0 %v1135
      %1490 = vmatprep.subr.bf16.mxu0 %v1138
      %1491 = vmatpush1.bf16.msra.mxu0 %v1137
      %1492 = vmatprep.subr.bf16.mxu0 %v1140
      %1493 = vmatpush1.bf16.msra.mxu0 %v1139
      %1494 = vmatprep.subr.bf16.mxu0 %v1142
      %1495 = vmatpush1.bf16.msra.mxu0 %v1141
      %1496 = vmatprep.mubr.bf16.mxu0 %v590
      %1497 = vmatmul.mubr.bf16.gmra.mrb[0].mxu0 %v589
      %v1498 = vpop.f32.mrb[0].mxu0
      %v1499 = vadd.f32 %v1306, %v1498
      %v1500 = vpop.f32.mrb[0].mxu0
      %v1501 = vadd.f32 %v1308, %v1500
      %v1502 = vpop.f32.mrb[0].mxu0
      %v1503 = vadd.f32 %v1310, %v1502
      %v1504 = vpop.f32.mrb[0].mxu0
      %v1505 = vadd.f32 %v1312, %v1504
      %1506 = vmatprep.mubr.bf16.mxu0 %v596
      %1507 = vmatmul.mubr.bf16.gmra.mrb[0].mxu0 %v595
      %v1508 = vpop.f32.mrb[0].mxu0
      %v1509 = vadd.f32 %v1316, %v1508
      %v1510 = vpop.f32.mrb[0].mxu0
      %v1511 = vadd.f32 %v1318, %v1510
      %v1512 = vpop.f32.mrb[0].mxu0
      %v1513 = vadd.f32 %v1320, %v1512
      %v1514 = vpop.f32.mrb[0].mxu0
      %v1515 = vadd.f32 %v1322, %v1514
      %1516 = vmatprep.mubr.bf16.mxu0 %v602
      %1517 = vmatmul.mubr.bf16.gmra.mrb[0].mxu0 %v601
      %v1518 = vpop.f32.mrb[0].mxu0
      %v1519 = vadd.f32 %v1326, %v1518
      %v1520 = vpop.f32.mrb[0].mxu0
      %v1521 = vadd.f32 %v1328, %v1520
      %v1522 = vpop.f32.mrb[0].mxu0
      %v1523 = vadd.f32 %v1330, %v1522
      %v1524 = vpop.f32.mrb[0].mxu0
      %v1525 = vadd.f32 %v1332, %v1524
      %1526 = vmatprep.mubr.bf16.mxu0 %v608
      %1527 = vmatmul.mubr.bf16.gmra.mrb[0].mxu0 %v607
      %v1528 = vpop.f32.mrb[0].mxu0
      %v1529 = vadd.f32 %v1336, %v1528
      %v1530 = vpop.f32.mrb[0].mxu0
      %v1531 = vadd.f32 %v1338, %v1530
      %v1532 = vpop.f32.mrb[0].mxu0
      %v1533 = vadd.f32 %v1340, %v1532
      %v1534 = vpop.f32.mrb[0].mxu0
      %v1535 = vadd.f32 %v1342, %v1534
      %1536 = vmatprep.mubr.bf16.mxu0 %v614
      %1537 = vmatmul.mubr.bf16.gmra.mrb[0].mxu0 %v613
      %v1538 = vpop.f32.mrb[0].mxu0
      %v1539 = vadd.f32 %v1346, %v1538
      %v1540 = vpop.f32.mrb[0].mxu0
      %v1541 = vadd.f32 %v1348, %v1540
      %v1542 = vpop.f32.mrb[0].mxu0
      %v1543 = vadd.f32 %v1350, %v1542
      %v1544 = vpop.f32.mrb[0].mxu0
      %v1545 = vadd.f32 %v1352, %v1544
      %1546 = vmatprep.mubr.bf16.mxu0 %v620
      %1547 = vmatmul.mubr.bf16.gmra.mrb[0].mxu0 %v619
      %v1548 = vpop.f32.mrb[0].mxu0
      %v1549 = vadd.f32 %v1356, %v1548
      %v1550 = vpop.f32.mrb[0].mxu0
      %v1551 = vadd.f32 %v1358, %v1550
      %v1552 = vpop.f32.mrb[0].mxu0
      %v1553 = vadd.f32 %v1360, %v1552
      %v1554 = vpop.f32.mrb[0].mxu0
      %v1555 = vadd.f32 %v1362, %v1554
      %1556 = vmatprep.mubr.bf16.mxu0 %v626
      %1557 = vmatmul.mubr.bf16.gmra.mrb[0].mxu0 %v625
      %v1558 = vpop.f32.mrb[0].mxu0
      %v1559 = vadd.f32 %v1366, %v1558
      %v1560 = vpop.f32.mrb[0].mxu0
      %v1561 = vadd.f32 %v1368, %v1560
      %v1562 = vpop.f32.mrb[0].mxu0
      %v1563 = vadd.f32 %v1370, %v1562
      %v1564 = vpop.f32.mrb[0].mxu0
      %v1565 = vadd.f32 %v1372, %v1564
      %1566 = vmatprep.mubr.bf16.mxu0 %v632
      %1567 = vmatmul.mubr.bf16.gmra.mrb[0].mxu0 %v631
      %v1568 = vpop.f32.mrb[0].mxu0
      %v1569 = vadd.f32 %v1376, %v1568
      %v1570 = vpop.f32.mrb[0].mxu0
      %v1571 = vadd.f32 %v1378, %v1570
      %v1572 = vpop.f32.mrb[0].mxu0
      %v1573 = vadd.f32 %v1380, %v1572
      %v1574 = vpop.f32.mrb[0].mxu0
      %v1575 = vadd.f32 %v1382, %v1574
      %1576 = vmatprep.mubr.bf16.mxu0 %v638
      %1577 = vmatmul.mubr.bf16.gmra.mrb[0].mxu0 %v637
      %v1578 = vpop.f32.mrb[0].mxu0
      %v1579 = vadd.f32 %v1386, %v1578
      %v1580 = vpop.f32.mrb[0].mxu0
      %v1581 = vadd.f32 %v1388, %v1580
      %v1582 = vpop.f32.mrb[0].mxu0
      %v1583 = vadd.f32 %v1390, %v1582
      %v1584 = vpop.f32.mrb[0].mxu0
      %v1585 = vadd.f32 %v1392, %v1584
      %1586 = vmatprep.mubr.bf16.mxu0 %v644
      %1587 = vmatmul.mubr.bf16.gmra.mrb[0].mxu0 %v643
      %v1588 = vpop.f32.mrb[0].mxu0
      %v1589 = vadd.f32 %v1396, %v1588
      %v1590 = vpop.f32.mrb[0].mxu0
      %v1591 = vadd.f32 %v1398, %v1590
      %v1592 = vpop.f32.mrb[0].mxu0
      %v1593 = vadd.f32 %v1400, %v1592
      %v1594 = vpop.f32.mrb[0].mxu0
      %v1595 = vadd.f32 %v1402, %v1594
      %1596 = vmatprep.mubr.bf16.mxu0 %v650
      %1597 = vmatmul.mubr.bf16.gmra.mrb[0].mxu0 %v649
      %v1598 = vpop.f32.mrb[0].mxu0
      %v1599 = vadd.f32 %v1406, %v1598
      %v1600 = vpop.f32.mrb[0].mxu0
      %v1601 = vadd.f32 %v1408, %v1600
      %v1602 = vpop.f32.mrb[0].mxu0
      %v1603 = vadd.f32 %v1410, %v1602
      %v1604 = vpop.f32.mrb[0].mxu0
      %v1605 = vadd.f32 %v1412, %v1604
      %1606 = vmatprep.mubr.bf16.mxu0 %v656
      %1607 = vmatmul.mubr.bf16.gmra.mrb[0].mxu0 %v655
      %v1608 = vpop.f32.mrb[0].mxu0
      %v1609 = vadd.f32 %v1416, %v1608
      %v1610 = vpop.f32.mrb[0].mxu0
      %v1611 = vadd.f32 %v1418, %v1610
      %v1612 = vpop.f32.mrb[0].mxu0
      %v1613 = vadd.f32 %v1420, %v1612
      %v1614 = vpop.f32.mrb[0].mxu0
      %v1615 = vadd.f32 %v1422, %v1614
      %1616 = vmatprep.mubr.bf16.mxu0 %v662
      %1617 = vmatmul.mubr.bf16.gmra.mrb[0].mxu0 %v661
      %v1618 = vpop.f32.mrb[0].mxu0
      %v1619 = vadd.f32 %v1426, %v1618
      %v1620 = vpop.f32.mrb[0].mxu0
      %v1621 = vadd.f32 %v1428, %v1620
      %v1622 = vpop.f32.mrb[0].mxu0
      %v1623 = vadd.f32 %v1430, %v1622
      %v1624 = vpop.f32.mrb[0].mxu0
      %v1625 = vadd.f32 %v1432, %v1624
      %1626 = vmatprep.mubr.bf16.mxu0 %v668
      %1627 = vmatmul.mubr.bf16.gmra.mrb[0].mxu0 %v667
      %v1628 = vpop.f32.mrb[0].mxu0
      %v1629 = vadd.f32 %v1436, %v1628
      %v1630 = vpop.f32.mrb[0].mxu0
      %v1631 = vadd.f32 %v1438, %v1630
      %v1632 = vpop.f32.mrb[0].mxu0
      %v1633 = vadd.f32 %v1440, %v1632
      %v1634 = vpop.f32.mrb[0].mxu0
      %v1635 = vadd.f32 %v1442, %v1634
      %1636 = vmatprep.mubr.bf16.mxu0 %v674
      %1637 = vmatmul.mubr.bf16.gmra.mrb[0].mxu0 %v673
      %v1638 = vpop.f32.mrb[0].mxu0
      %v1639 = vadd.f32 %v1446, %v1638
      %v1640 = vpop.f32.mrb[0].mxu0
      %v1641 = vadd.f32 %v1448, %v1640
      %v1642 = vpop.f32.mrb[0].mxu0
      %v1643 = vadd.f32 %v1450, %v1642
      %v1644 = vpop.f32.mrb[0].mxu0
      %v1645 = vadd.f32 %v1452, %v1644
      %1646 = vmatprep.mubr.bf16.mxu0 %v680
      %1647 = vmatmul.mubr.bf16.gmra.mrb[0].mxu0 %v679
      %v1648 = vpop.f32.mrb[0].mxu0
      %v1649 = vadd.f32 %v1456, %v1648
      %v1650 = vpop.f32.mrb[0].mxu0
      %v1651 = vadd.f32 %v1458, %v1650
      %v1652 = vpop.f32.mrb[0].mxu0
      %v1653 = vadd.f32 %v1460, %v1652
      %v1654 = vpop.f32.mrb[0].mxu0
      %v1655 = vadd.f32 %v1462, %v1654
      %1656 = vdwg.mxu0
      %1657 = vmatprep.subr.bf16.mxu0 %v1144
      %1658 = vmatpush1.bf16.msra.mxu0 %v1143
      %1659 = vmatprep.subr.bf16.mxu0 %v1146
      %1660 = vmatpush1.bf16.msra.mxu0 %v1145
      %1661 = vmatprep.subr.bf16.mxu0 %v1148
      %1662 = vmatpush1.bf16.msra.mxu0 %v1147
      %1663 = vmatprep.subr.bf16.mxu0 %v1150
      %1664 = vmatpush1.bf16.msra.mxu0 %v1149
      %1665 = vmatprep.subr.bf16.mxu0 %v1152
      %1666 = vmatpush1.bf16.msra.mxu0 %v1151
      %1667 = vmatprep.subr.bf16.mxu0 %v1154
      %1668 = vmatpush1.bf16.msra.mxu0 %v1153
      %1669 = vmatprep.subr.bf16.mxu0 %v1156
      %1670 = vmatpush1.bf16.msra.mxu0 %v1155
      %1671 = vmatprep.subr.bf16.mxu0 %v1158
      %1672 = vmatpush1.bf16.msra.mxu0 %v1157
      %1673 = vmatprep.subr.bf16.mxu0 %v1160
      %1674 = vmatpush1.bf16.msra.mxu0 %v1159
      %1675 = vmatprep.subr.bf16.mxu0 %v1162
      %1676 = vmatpush1.bf16.msra.mxu0 %v1161
      %1677 = vmatprep.subr.bf16.mxu0 %v1164
      %1678 = vmatpush1.bf16.msra.mxu0 %v1163
      %1679 = vmatprep.subr.bf16.mxu0 %v1166
      %1680 = vmatpush1.bf16.msra.mxu0 %v1165
      %1681 = vmatprep.subr.bf16.mxu0 %v1168
      %1682 = vmatpush1.bf16.msra.mxu0 %v1167
      %1683 = vmatprep.subr.bf16.mxu0 %v1170
      %1684 = vmatpush1.bf16.msra.mxu0 %v1169
      %1685 = vmatprep.subr.bf16.mxu0 %v1172
      %1686 = vmatpush1.bf16.msra.mxu0 %v1171
      %1687 = vmatprep.subr.bf16.mxu0 %v1174
      %1688 = vmatpush1.bf16.msra.mxu0 %v1173
      %1689 = vmatprep.mubr.bf16.mxu0 %v592
      %1690 = vmatmul.mubr.bf16.gmra.mrb[0].mxu0 %v591
      %v1691 = vpop.f32.mrb[0].mxu0
      %v1692 = vadd.f32 %v1499, %v1691
      %v1693 = vpop.f32.mrb[0].mxu0
      %v1694 = vadd.f32 %v1501, %v1693
      %v1695 = vpop.f32.mrb[0].mxu0
      %v1696 = vadd.f32 %v1503, %v1695
      %v1697 = vpop.f32.mrb[0].mxu0
      %v1698 = vadd.f32 %v1505, %v1697
      %1699 = vmatprep.mubr.bf16.mxu0 %v598
      %1700 = vmatmul.mubr.bf16.gmra.mrb[0].mxu0 %v597
      %v1701 = vpop.f32.mrb[0].mxu0
      %v1702 = vadd.f32 %v1509, %v1701
      %v1703 = vpop.f32.mrb[0].mxu0
      %v1704 = vadd.f32 %v1511, %v1703
      %v1705 = vpop.f32.mrb[0].mxu0
      %v1706 = vadd.f32 %v1513, %v1705
      %v1707 = vpop.f32.mrb[0].mxu0
      %v1708 = vadd.f32 %v1515, %v1707
      %1709 = vmatprep.mubr.bf16.mxu0 %v604
      %1710 = vmatmul.mubr.bf16.gmra.mrb[0].mxu0 %v603
      %v1711 = vpop.f32.mrb[0].mxu0
      %v1712 = vadd.f32 %v1519, %v1711
      %v1713 = vpop.f32.mrb[0].mxu0
      %v1714 = vadd.f32 %v1521, %v1713
      %v1715 = vpop.f32.mrb[0].mxu0
      %v1716 = vadd.f32 %v1523, %v1715
      %v1717 = vpop.f32.mrb[0].mxu0
      %v1718 = vadd.f32 %v1525, %v1717
      %1719 = vmatprep.mubr.bf16.mxu0 %v610
      %1720 = vmatmul.mubr.bf16.gmra.mrb[0].mxu0 %v609
      %v1721 = vpop.f32.mrb[0].mxu0
      %v1722 = vadd.f32 %v1529, %v1721
      %v1723 = vpop.f32.mrb[0].mxu0
      %v1724 = vadd.f32 %v1531, %v1723
      %v1725 = vpop.f32.mrb[0].mxu0
      %v1726 = vadd.f32 %v1533, %v1725
      %v1727 = vpop.f32.mrb[0].mxu0
      %v1728 = vadd.f32 %v1535, %v1727
      %1729 = vmatprep.mubr.bf16.mxu0 %v616
      %1730 = vmatmul.mubr.bf16.gmra.mrb[0].mxu0 %v615
      %v1731 = vpop.f32.mrb[0].mxu0
      %v1732 = vadd.f32 %v1539, %v1731
      %v1733 = vpop.f32.mrb[0].mxu0
      %v1734 = vadd.f32 %v1541, %v1733
      %v1735 = vpop.f32.mrb[0].mxu0
      %v1736 = vadd.f32 %v1543, %v1735
      %v1737 = vpop.f32.mrb[0].mxu0
      %v1738 = vadd.f32 %v1545, %v1737
      %1739 = vmatprep.mubr.bf16.mxu0 %v622
      %1740 = vmatmul.mubr.bf16.gmra.mrb[0].mxu0 %v621
      %v1741 = vpop.f32.mrb[0].mxu0
      %v1742 = vadd.f32 %v1549, %v1741
      %v1743 = vpop.f32.mrb[0].mxu0
      %v1744 = vadd.f32 %v1551, %v1743
      %v1745 = vpop.f32.mrb[0].mxu0
      %v1746 = vadd.f32 %v1553, %v1745
      %v1747 = vpop.f32.mrb[0].mxu0
      %v1748 = vadd.f32 %v1555, %v1747
      %1749 = vmatprep.mubr.bf16.mxu0 %v628
      %1750 = vmatmul.mubr.bf16.gmra.mrb[0].mxu0 %v627
      %v1751 = vpop.f32.mrb[0].mxu0
      %v1752 = vadd.f32 %v1559, %v1751
      %v1753 = vpop.f32.mrb[0].mxu0
      %v1754 = vadd.f32 %v1561, %v1753
      %v1755 = vpop.f32.mrb[0].mxu0
      %v1756 = vadd.f32 %v1563, %v1755
      %v1757 = vpop.f32.mrb[0].mxu0
      %v1758 = vadd.f32 %v1565, %v1757
      %1759 = vmatprep.mubr.bf16.mxu0 %v634
      %1760 = vmatmul.mubr.bf16.gmra.mrb[0].mxu0 %v633
      %v1761 = vpop.f32.mrb[0].mxu0
      %v1762 = vadd.f32 %v1569, %v1761
      %v1763 = vpop.f32.mrb[0].mxu0
      %v1764 = vadd.f32 %v1571, %v1763
      %v1765 = vpop.f32.mrb[0].mxu0
      %v1766 = vadd.f32 %v1573, %v1765
      %v1767 = vpop.f32.mrb[0].mxu0
      %v1768 = vadd.f32 %v1575, %v1767
      %1769 = vmatprep.mubr.bf16.mxu0 %v640
      %1770 = vmatmul.mubr.bf16.gmra.mrb[0].mxu0 %v639
      %v1771 = vpop.f32.mrb[0].mxu0
      %v1772 = vadd.f32 %v1579, %v1771
      %v1773 = vpop.f32.mrb[0].mxu0
      %v1774 = vadd.f32 %v1581, %v1773
      %v1775 = vpop.f32.mrb[0].mxu0
      %v1776 = vadd.f32 %v1583, %v1775
      %v1777 = vpop.f32.mrb[0].mxu0
      %v1778 = vadd.f32 %v1585, %v1777
      %1779 = vmatprep.mubr.bf16.mxu0 %v646
      %1780 = vmatmul.mubr.bf16.gmra.mrb[0].mxu0 %v645
      %v1781 = vpop.f32.mrb[0].mxu0
      %v1782 = vadd.f32 %v1589, %v1781
      %v1783 = vpop.f32.mrb[0].mxu0
      %v1784 = vadd.f32 %v1591, %v1783
      %v1785 = vpop.f32.mrb[0].mxu0
      %v1786 = vadd.f32 %v1593, %v1785
      %v1787 = vpop.f32.mrb[0].mxu0
      %v1788 = vadd.f32 %v1595, %v1787
      %1789 = vmatprep.mubr.bf16.mxu0 %v652
      %1790 = vmatmul.mubr.bf16.gmra.mrb[0].mxu0 %v651
      %v1791 = vpop.f32.mrb[0].mxu0
      %v1792 = vadd.f32 %v1599, %v1791
      %v1793 = vpop.f32.mrb[0].mxu0
      %v1794 = vadd.f32 %v1601, %v1793
      %v1795 = vpop.f32.mrb[0].mxu0
      %v1796 = vadd.f32 %v1603, %v1795
      %v1797 = vpop.f32.mrb[0].mxu0
      %v1798 = vadd.f32 %v1605, %v1797
      %1799 = vmatprep.mubr.bf16.mxu0 %v658
      %1800 = vmatmul.mubr.bf16.gmra.mrb[0].mxu0 %v657
      %v1801 = vpop.f32.mrb[0].mxu0
      %v1802 = vadd.f32 %v1609, %v1801
      %v1803 = vpop.f32.mrb[0].mxu0
      %v1804 = vadd.f32 %v1611, %v1803
      %v1805 = vpop.f32.mrb[0].mxu0
      %v1806 = vadd.f32 %v1613, %v1805
      %v1807 = vpop.f32.mrb[0].mxu0
      %v1808 = vadd.f32 %v1615, %v1807
      %1809 = vmatprep.mubr.bf16.mxu0 %v664
      %1810 = vmatmul.mubr.bf16.gmra.mrb[0].mxu0 %v663
      %v1811 = vpop.f32.mrb[0].mxu0
      %v1812 = vadd.f32 %v1619, %v1811
      %v1813 = vpop.f32.mrb[0].mxu0
      %v1814 = vadd.f32 %v1621, %v1813
      %v1815 = vpop.f32.mrb[0].mxu0
      %v1816 = vadd.f32 %v1623, %v1815
      %v1817 = vpop.f32.mrb[0].mxu0
      %v1818 = vadd.f32 %v1625, %v1817
      %1819 = vmatprep.mubr.bf16.mxu0 %v670
      %1820 = vmatmul.mubr.bf16.gmra.mrb[0].mxu0 %v669
      %v1821 = vpop.f32.mrb[0].mxu0
      %v1822 = vadd.f32 %v1629, %v1821
      %v1823 = vpop.f32.mrb[0].mxu0
      %v1824 = vadd.f32 %v1631, %v1823
      %v1825 = vpop.f32.mrb[0].mxu0
      %v1826 = vadd.f32 %v1633, %v1825
      %v1827 = vpop.f32.mrb[0].mxu0
      %v1828 = vadd.f32 %v1635, %v1827
      %1829 = vmatprep.mubr.bf16.mxu0 %v676
      %1830 = vmatmul.mubr.bf16.gmra.mrb[0].mxu0 %v675
      %v1831 = vpop.f32.mrb[0].mxu0
      %v1832 = vadd.f32 %v1639, %v1831
      %v1833 = vpop.f32.mrb[0].mxu0
      %v1834 = vadd.f32 %v1641, %v1833
      %v1835 = vpop.f32.mrb[0].mxu0
      %v1836 = vadd.f32 %v1643, %v1835
      %v1837 = vpop.f32.mrb[0].mxu0
      %v1838 = vadd.f32 %v1645, %v1837
      %1839 = vmatprep.mubr.bf16.mxu0 %v682
      %1840 = vmatmul.mubr.bf16.gmra.mrb[0].mxu0 %v681
      %v1841 = vpop.f32.mrb[0].mxu0
      %v1842 = vadd.f32 %v1649, %v1841
      %v1843 = vpop.f32.mrb[0].mxu0
      %v1844 = vadd.f32 %v1651, %v1843
      %v1845 = vpop.f32.mrb[0].mxu0
      %v1846 = vadd.f32 %v1653, %v1845
      %v1847 = vpop.f32.mrb[0].mxu0
      %v1848 = vadd.f32 %v1655, %v1847
      %1849 = vdwg.mxu0
      %v1850 = vmax.f32 %v1692, 0.0
      %v1851 = vmax.f32 %v1694, 0.0
      %v1852 = vmax.f32 %v1696, 0.0
      %v1853 = vmax.f32 %v1698, 0.0
      %v1854 = vmax.f32 %v1702, 0.0
      %v1855 = vmax.f32 %v1704, 0.0
      %v1856 = vmax.f32 %v1706, 0.0
      %v1857 = vmax.f32 %v1708, 0.0
      %v1858 = vmax.f32 %v1712, 0.0
      %v1859 = vmax.f32 %v1714, 0.0
      %v1860 = vmax.f32 %v1716, 0.0
      %v1861 = vmax.f32 %v1718, 0.0
      %v1862 = vmax.f32 %v1722, 0.0
      %v1863 = vmax.f32 %v1724, 0.0
      %v1864 = vmax.f32 %v1726, 0.0
      %v1865 = vmax.f32 %v1728, 0.0
      %v1866 = vmax.f32 %v1732, 0.0
      %v1867 = vmax.f32 %v1734, 0.0
      %v1868 = vmax.f32 %v1736, 0.0
      %v1869 = vmax.f32 %v1738, 0.0
      %v1870 = vmax.f32 %v1742, 0.0
      %v1871 = vmax.f32 %v1744, 0.0
      %v1872 = vmax.f32 %v1746, 0.0
      %v1873 = vmax.f32 %v1748, 0.0
      %v1874 = vmax.f32 %v1752, 0.0
      %v1875 = vmax.f32 %v1754, 0.0
      %v1876 = vmax.f32 %v1756, 0.0
      %v1877 = vmax.f32 %v1758, 0.0
      %v1878 = vmax.f32 %v1762, 0.0
      %v1879 = vmax.f32 %v1764, 0.0
      %v1880 = vmax.f32 %v1766, 0.0
      %v1881 = vmax.f32 %v1768, 0.0
      %v1882 = vmax.f32 %v1772, 0.0
      %v1883 = vmax.f32 %v1774, 0.0
      %v1884 = vmax.f32 %v1776, 0.0
      %v1885 = vmax.f32 %v1778, 0.0
      %v1886 = vmax.f32 %v1782, 0.0
      %v1887 = vmax.f32 %v1784, 0.0
      %v1888 = vmax.f32 %v1786, 0.0
      %v1889 = vmax.f32 %v1788, 0.0
      %v1890 = vmax.f32 %v1792, 0.0
      %v1891 = vmax.f32 %v1794, 0.0
      %v1892 = vmax.f32 %v1796, 0.0
      %v1893 = vmax.f32 %v1798, 0.0
      %v1894 = vmax.f32 %v1802, 0.0
      %v1895 = vmax.f32 %v1804, 0.0
      %v1896 = vmax.f32 %v1806, 0.0
      %v1897 = vmax.f32 %v1808, 0.0
      %v1898 = vmax.f32 %v1812, 0.0
      %v1899 = vmax.f32 %v1814, 0.0
      %v1900 = vmax.f32 %v1816, 0.0
      %v1901 = vmax.f32 %v1818, 0.0
      %v1902 = vmax.f32 %v1822, 0.0
      %v1903 = vmax.f32 %v1824, 0.0
      %v1904 = vmax.f32 %v1826, 0.0
      %v1905 = vmax.f32 %v1828, 0.0
      %v1906 = vmax.f32 %v1832, 0.0
      %v1907 = vmax.f32 %v1834, 0.0
      %v1908 = vmax.f32 %v1836, 0.0
      %v1909 = vmax.f32 %v1838, 0.0
      %v1910 = vmax.f32 %v1842, 0.0
      %v1911 = vmax.f32 %v1844, 0.0
      %v1912 = vmax.f32 %v1846, 0.0
      %v1913 = vmax.f32 %v1848, 0.0
      %v1914 = vpack.c.bf16 %v1852, %v1850
      %v1915 = vpack.c.bf16 %v1853, %v1851
      %v1916 = vpack.c.bf16 %v1856, %v1854
      %v1917 = vpack.c.bf16 %v1857, %v1855
      %v1918 = vpack.c.bf16 %v1860, %v1858
      %v1919 = vpack.c.bf16 %v1861, %v1859
      %v1920 = vpack.c.bf16 %v1864, %v1862
      %v1921 = vpack.c.bf16 %v1865, %v1863
      %v1922 = vpack.c.bf16 %v1868, %v1866
      %v1923 = vpack.c.bf16 %v1869, %v1867
      %v1924 = vpack.c.bf16 %v1872, %v1870
      %v1925 = vpack.c.bf16 %v1873, %v1871
      %v1926 = vpack.c.bf16 %v1876, %v1874
      %v1927 = vpack.c.bf16 %v1877, %v1875
      %v1928 = vpack.c.bf16 %v1880, %v1878
      %v1929 = vpack.c.bf16 %v1881, %v1879
      %v1930 = vpack.c.bf16 %v1884, %v1882
      %v1931 = vpack.c.bf16 %v1885, %v1883
      %v1932 = vpack.c.bf16 %v1888, %v1886
      %v1933 = vpack.c.bf16 %v1889, %v1887
      %v1934 = vpack.c.bf16 %v1892, %v1890
      %v1935 = vpack.c.bf16 %v1893, %v1891
      %v1936 = vpack.c.bf16 %v1896, %v1894
      %v1937 = vpack.c.bf16 %v1897, %v1895
      %v1938 = vpack.c.bf16 %v1900, %v1898
      %v1939 = vpack.c.bf16 %v1901, %v1899
      %v1940 = vpack.c.bf16 %v1904, %v1902
      %v1941 = vpack.c.bf16 %v1905, %v1903
      %v1942 = vpack.c.bf16 %v1908, %v1906
      %v1943 = vpack.c.bf16 %v1909, %v1907
      %v1944 = vpack.c.bf16 %v1912, %v1910
      %v1945 = vpack.c.bf16 %v1913, %v1911
      %v1946 = vld [vmem:[%s3] sm:$0xf]
      %v1947 = vld [vmem:[%s3 + $0x4] sm:$0xf]
      %v1948 = vld [vmem:[%s3 + $0x8] sm:$0xf]
      %v1949 = vld [vmem:[%s3 + $0xc] sm:$0xf]
      %v1950 = vld [vmem:[%s3 + $0x10] sm:$0xf]
      %v1951 = vld [vmem:[%s3 + $0x14] sm:$0xf]
      %v1952 = vld [vmem:[%s3 + $0x18] sm:$0xf]
      %v1953 = vld [vmem:[%s3 + $0x1c] sm:$0xf]
      %v1954 = vld [vmem:[%s3 + $0x20] sm:$0xf]
      %v1955 = vld [vmem:[%s3 + $0x24] sm:$0xf]
      %v1956 = vld [vmem:[%s3 + $0x28] sm:$0xf]
      %v1957 = vld [vmem:[%s3 + $0x2c] sm:$0xf]
      %v1958 = vld [vmem:[%s3 + $0x30] sm:$0xf]
      %v1959 = vld [vmem:[%s3 + $0x34] sm:$0xf]
      %v1960 = vld [vmem:[%s3 + $0x38] sm:$0xf]
      %v1961 = vld [vmem:[%s3 + $0x3c] sm:$0xf]
      %v1962 = vld [vmem:[%s3 + $0x40] sm:$0xf]
      %v1963 = vld [vmem:[%s3 + $0x44] sm:$0xf]
      %v1964 = vld [vmem:[%s3 + $0x48] sm:$0xf]
      %v1965 = vld [vmem:[%s3 + $0x4c] sm:$0xf]
      %v1966 = vld [vmem:[%s3 + $0x50] sm:$0xf]
      %v1967 = vld [vmem:[%s3 + $0x54] sm:$0xf]
      %v1968 = vld [vmem:[%s3 + $0x58] sm:$0xf]
      %v1969 = vld [vmem:[%s3 + $0x5c] sm:$0xf]
      %v1970 = vld [vmem:[%s3 + $0x60] sm:$0xf]
      %v1971 = vld [vmem:[%s3 + $0x64] sm:$0xf]
      %v1972 = vld [vmem:[%s3 + $0x68] sm:$0xf]
      %v1973 = vld [vmem:[%s3 + $0x6c] sm:$0xf]
      %v1974 = vld [vmem:[%s3 + $0x70] sm:$0xf]
      %v1975 = vld [vmem:[%s3 + $0x74] sm:$0xf]
      %v1976 = vld [vmem:[%s3 + $0x78] sm:$0xf]
      %v1977 = vld [vmem:[%s3 + $0x7c] sm:$0xf]
      %v1978 = vld [vmem:[%s4] sm:$0x1]
      %v1980 = vlaneseq
      %v1981 = vshrl.u32 %v1980, 7
      %v1982 = vsub.s32 0, %v1981
      %v1983 = vrot.slane %v1978, %v1982
      %v2017 = vunpack.c.l.b16 %v1946
      %v2018 = vunpack.c.l.b16 %v1947
      %v2019 = vunpack.c.l.b16 %v1948
      %v2020 = vunpack.c.l.b16 %v1949
      %v2021 = vunpack.c.l.b16 %v1950
      %v2022 = vunpack.c.l.b16 %v1951
      %v2023 = vunpack.c.l.b16 %v1952
      %v2024 = vunpack.c.l.b16 %v1953
      %v2025 = vunpack.c.l.b16 %v1954
      %v2026 = vunpack.c.l.b16 %v1955
      %v2027 = vunpack.c.l.b16 %v1956
      %v2028 = vunpack.c.l.b16 %v1957
      %v2029 = vunpack.c.l.b16 %v1958
      %v2030 = vunpack.c.l.b16 %v1959
      %v2031 = vunpack.c.l.b16 %v1960
      %v2032 = vunpack.c.l.b16 %v1961
      %v2033 = vunpack.c.l.b16 %v1962
      %v2034 = vunpack.c.l.b16 %v1963
      %v2035 = vunpack.c.l.b16 %v1964
      %v2036 = vunpack.c.l.b16 %v1965
      %v2037 = vunpack.c.l.b16 %v1966
      %v2038 = vunpack.c.l.b16 %v1967
      %v2039 = vunpack.c.l.b16 %v1968
      %v2040 = vunpack.c.l.b16 %v1969
      %v2041 = vunpack.c.l.b16 %v1970
      %v2042 = vunpack.c.l.b16 %v1971
      %v2043 = vunpack.c.l.b16 %v1972
      %v2044 = vunpack.c.l.b16 %v1973
      %v2045 = vunpack.c.l.b16 %v1974
      %v2046 = vunpack.c.l.b16 %v1975
      %v2047 = vunpack.c.l.b16 %v1976
      %v2048 = vunpack.c.l.b16 %v1977
      %v2049 = vpack.c.b16 %v2018, %v2017
      %v2050 = vpack.c.b16 %v2020, %v2019
      %v2051 = vpack.c.b16 %v2022, %v2021
      %v2052 = vpack.c.b16 %v2024, %v2023
      %v2053 = vpack.c.b16 %v2026, %v2025
      %v2054 = vpack.c.b16 %v2028, %v2027
      %v2055 = vpack.c.b16 %v2030, %v2029
      %v2056 = vpack.c.b16 %v2032, %v2031
      %v2057 = vpack.c.b16 %v2034, %v2033
      %v2058 = vpack.c.b16 %v2036, %v2035
      %v2059 = vpack.c.b16 %v2038, %v2037
      %v2060 = vpack.c.b16 %v2040, %v2039
      %v2061 = vpack.c.b16 %v2042, %v2041
      %v2062 = vpack.c.b16 %v2044, %v2043
      %v2063 = vpack.c.b16 %v2046, %v2045
      %v2064 = vpack.c.b16 %v2048, %v2047
      %2081 = vmatprep.subr.bf16.mxu0 0
      %2082 = vmatpush1.bf16.msra.mxu0 %v2049
      %2083 = vmatprep.subr.bf16.mxu0 0
      %2084 = vmatpush1.bf16.msra.mxu0 %v2050
      %2085 = vmatprep.subr.bf16.mxu0 0
      %2086 = vmatpush1.bf16.msra.mxu0 %v2051
      %2087 = vmatprep.subr.bf16.mxu0 0
      %2088 = vmatpush1.bf16.msra.mxu0 %v2052
      %2089 = vmatprep.subr.bf16.mxu0 0
      %2090 = vmatpush1.bf16.msra.mxu0 %v2053
      %2091 = vmatprep.subr.bf16.mxu0 0
      %2092 = vmatpush1.bf16.msra.mxu0 %v2054
      %2093 = vmatprep.subr.bf16.mxu0 0
      %2094 = vmatpush1.bf16.msra.mxu0 %v2055
      %2095 = vmatprep.subr.bf16.mxu0 0
      %2096 = vmatpush1.bf16.msra.mxu0 %v2056
      %2097 = vmatprep.subr.bf16.mxu0 0
      %2098 = vmatpush1.bf16.msra.mxu0 %v2057
      %2099 = vmatprep.subr.bf16.mxu0 0
      %2100 = vmatpush1.bf16.msra.mxu0 %v2058
      %2101 = vmatprep.subr.bf16.mxu0 0
      %2102 = vmatpush1.bf16.msra.mxu0 %v2059
      %2103 = vmatprep.subr.bf16.mxu0 0
      %2104 = vmatpush1.bf16.msra.mxu0 %v2060
      %2105 = vmatprep.subr.bf16.mxu0 0
      %2106 = vmatpush1.bf16.msra.mxu0 %v2061
      %2107 = vmatprep.subr.bf16.mxu0 0
      %2108 = vmatpush1.bf16.msra.mxu0 %v2062
      %2109 = vmatprep.subr.bf16.mxu0 0
      %2110 = vmatpush1.bf16.msra.mxu0 %v2063
      %2111 = vmatprep.subr.bf16.mxu0 0
      %2112 = vmatpush1.bf16.msra.mxu0 %v2064
      %2113 = vmatprep.mubr.bf16.mxu0 %v1915
      %2114 = vmatmul.mubr.bf16.gmra.mrb[0].mxu0 %v1914
      %v2115 = vpop.f32.mrb[0].mxu0
      %v2116 = vadd.f32 %v1983, %v2115
      %v2117 = vpop.f32.mrb[0].mxu0
      %v2118 = vpop.f32.mrb[0].mxu0
      %v2119 = vadd.f32 %v1983, %v2118
      %v2120 = vpop.f32.mrb[0].mxu0
      %2121 = vmatprep.mubr.bf16.mxu0 %v1917
      %2122 = vmatmul.mubr.bf16.gmra.mrb[0].mxu0 %v1916
      %v2123 = vpop.f32.mrb[0].mxu0
      %v2124 = vadd.f32 %v1983, %v2123
      %v2125 = vpop.f32.mrb[0].mxu0
      %v2126 = vpop.f32.mrb[0].mxu0
      %v2127 = vadd.f32 %v1983, %v2126
      %v2128 = vpop.f32.mrb[0].mxu0
      %2129 = vmatprep.mubr.bf16.mxu0 %v1919
      %2130 = vmatmul.mubr.bf16.gmra.mrb[0].mxu0 %v1918
      %v2131 = vpop.f32.mrb[0].mxu0
      %v2132 = vadd.f32 %v1983, %v2131
      %v2133 = vpop.f32.mrb[0].mxu0
      %v2134 = vpop.f32.mrb[0].mxu0
      %v2135 = vadd.f32 %v1983, %v2134
      %v2136 = vpop.f32.mrb[0].mxu0
      %2137 = vmatprep.mubr.bf16.mxu0 %v1921
      %2138 = vmatmul.mubr.bf16.gmra.mrb[0].mxu0 %v1920
      %v2139 = vpop.f32.mrb[0].mxu0
      %v2140 = vadd.f32 %v1983, %v2139
      %v2141 = vpop.f32.mrb[0].mxu0
      %v2142 = vpop.f32.mrb[0].mxu0
      %v2143 = vadd.f32 %v1983, %v2142
      %v2144 = vpop.f32.mrb[0].mxu0
      %2145 = vmatprep.mubr.bf16.mxu0 %v1923
      %2146 = vmatmul.mubr.bf16.gmra.mrb[0].mxu0 %v1922
      %v2147 = vpop.f32.mrb[0].mxu0
      %v2148 = vadd.f32 %v1983, %v2147
      %v2149 = vpop.f32.mrb[0].mxu0
      %v2150 = vpop.f32.mrb[0].mxu0
      %v2151 = vadd.f32 %v1983, %v2150
      %v2152 = vpop.f32.mrb[0].mxu0
      %2153 = vmatprep.mubr.bf16.mxu0 %v1925
      %2154 = vmatmul.mubr.bf16.gmra.mrb[0].mxu0 %v1924
      %v2155 = vpop.f32.mrb[0].mxu0
      %v2156 = vadd.f32 %v1983, %v2155
      %v2157 = vpop.f32.mrb[0].mxu0
      %v2158 = vpop.f32.mrb[0].mxu0
      %v2159 = vadd.f32 %v1983, %v2158
      %v2160 = vpop.f32.mrb[0].mxu0
      %2161 = vmatprep.mubr.bf16.mxu0 %v1927
      %2162 = vmatmul.mubr.bf16.gmra.mrb[0].mxu0 %v1926
      %v2163 = vpop.f32.mrb[0].mxu0
      %v2164 = vadd.f32 %v1983, %v2163
      %v2165 = vpop.f32.mrb[0].mxu0
      %v2166 = vpop.f32.mrb[0].mxu0
      %v2167 = vadd.f32 %v1983, %v2166
      %v2168 = vpop.f32.mrb[0].mxu0
      %2169 = vmatprep.mubr.bf16.mxu0 %v1929
      %2170 = vmatmul.mubr.bf16.gmra.mrb[0].mxu0 %v1928
      %v2171 = vpop.f32.mrb[0].mxu0
      %v2172 = vadd.f32 %v1983, %v2171
      %v2173 = vpop.f32.mrb[0].mxu0
      %v2174 = vpop.f32.mrb[0].mxu0
      %v2175 = vadd.f32 %v1983, %v2174
      %v2176 = vpop.f32.mrb[0].mxu0
      %2177 = vmatprep.mubr.bf16.mxu0 %v1931
      %2178 = vmatmul.mubr.bf16.gmra.mrb[0].mxu0 %v1930
      %v2179 = vpop.f32.mrb[0].mxu0
      %v2180 = vadd.f32 %v1983, %v2179
      %v2181 = vpop.f32.mrb[0].mxu0
      %v2182 = vpop.f32.mrb[0].mxu0
      %v2183 = vadd.f32 %v1983, %v2182
      %v2184 = vpop.f32.mrb[0].mxu0
      %2185 = vmatprep.mubr.bf16.mxu0 %v1933
      %2186 = vmatmul.mubr.bf16.gmra.mrb[0].mxu0 %v1932
      %v2187 = vpop.f32.mrb[0].mxu0
      %v2188 = vadd.f32 %v1983, %v2187
      %v2189 = vpop.f32.mrb[0].mxu0
      %v2190 = vpop.f32.mrb[0].mxu0
      %v2191 = vadd.f32 %v1983, %v2190
      %v2192 = vpop.f32.mrb[0].mxu0
      %2193 = vmatprep.mubr.bf16.mxu0 %v1935
      %2194 = vmatmul.mubr.bf16.gmra.mrb[0].mxu0 %v1934
      %v2195 = vpop.f32.mrb[0].mxu0
      %v2196 = vadd.f32 %v1983, %v2195
      %v2197 = vpop.f32.mrb[0].mxu0
      %v2198 = vpop.f32.mrb[0].mxu0
      %v2199 = vadd.f32 %v1983, %v2198
      %v2200 = vpop.f32.mrb[0].mxu0
      %2201 = vmatprep.mubr.bf16.mxu0 %v1937
      %2202 = vmatmul.mubr.bf16.gmra.mrb[0].mxu0 %v1936
      %v2203 = vpop.f32.mrb[0].mxu0
      %v2204 = vadd.f32 %v1983, %v2203
      %v2205 = vpop.f32.mrb[0].mxu0
      %v2206 = vpop.f32.mrb[0].mxu0
      %v2207 = vadd.f32 %v1983, %v2206
      %v2208 = vpop.f32.mrb[0].mxu0
      %2209 = vmatprep.mubr.bf16.mxu0 %v1939
      %2210 = vmatmul.mubr.bf16.gmra.mrb[0].mxu0 %v1938
      %v2211 = vpop.f32.mrb[0].mxu0
      %v2212 = vadd.f32 %v1983, %v2211
      %v2213 = vpop.f32.mrb[0].mxu0
      %v2214 = vpop.f32.mrb[0].mxu0
      %v2215 = vadd.f32 %v1983, %v2214
      %v2216 = vpop.f32.mrb[0].mxu0
      %2217 = vmatprep.mubr.bf16.mxu0 %v1941
      %2218 = vmatmul.mubr.bf16.gmra.mrb[0].mxu0 %v1940
      %v2219 = vpop.f32.mrb[0].mxu0
      %v2220 = vadd.f32 %v1983, %v2219
      %v2221 = vpop.f32.mrb[0].mxu0
      %v2222 = vpop.f32.mrb[0].mxu0
      %v2223 = vadd.f32 %v1983, %v2222
      %v2224 = vpop.f32.mrb[0].mxu0
      %2225 = vmatprep.mubr.bf16.mxu0 %v1943
      %2226 = vmatmul.mubr.bf16.gmra.mrb[0].mxu0 %v1942
      %v2227 = vpop.f32.mrb[0].mxu0
      %v2228 = vadd.f32 %v1983, %v2227
      %v2229 = vpop.f32.mrb[0].mxu0
      %v2230 = vpop.f32.mrb[0].mxu0
      %v2231 = vadd.f32 %v1983, %v2230
      %v2232 = vpop.f32.mrb[0].mxu0
      %2233 = vmatprep.mubr.bf16.mxu0 %v1945
      %2234 = vmatmul.mubr.bf16.gmra.mrb[0].mxu0 %v1944
      %v2235 = vpop.f32.mrb[0].mxu0
      %v2236 = vadd.f32 %v1983, %v2235
      %v2237 = vpop.f32.mrb[0].mxu0
      %v2238 = vpop.f32.mrb[0].mxu0
      %v2239 = vadd.f32 %v1983, %v2238
      %v2240 = vpop.f32.mrb[0].mxu0
      %2241 = vdwg.mxu0
      %v2242 = vmax.f32 %v2116, 0.0
      %v2243 = vmax.f32 %v2119, 0.0
      %v2244 = vmax.f32 %v2124, 0.0
      %v2245 = vmax.f32 %v2127, 0.0
      %v2246 = vmax.f32 %v2132, 0.0
      %v2247 = vmax.f32 %v2135, 0.0
      %v2248 = vmax.f32 %v2140, 0.0
      %v2249 = vmax.f32 %v2143, 0.0
      %v2250 = vmax.f32 %v2148, 0.0
      %v2251 = vmax.f32 %v2151, 0.0
      %v2252 = vmax.f32 %v2156, 0.0
      %v2253 = vmax.f32 %v2159, 0.0
      %v2254 = vmax.f32 %v2164, 0.0
      %v2255 = vmax.f32 %v2167, 0.0
      %v2256 = vmax.f32 %v2172, 0.0
      %v2257 = vmax.f32 %v2175, 0.0
      %v2258 = vmax.f32 %v2180, 0.0
      %v2259 = vmax.f32 %v2183, 0.0
      %v2260 = vmax.f32 %v2188, 0.0
      %v2261 = vmax.f32 %v2191, 0.0
      %v2262 = vmax.f32 %v2196, 0.0
      %v2263 = vmax.f32 %v2199, 0.0
      %v2264 = vmax.f32 %v2204, 0.0
      %v2265 = vmax.f32 %v2207, 0.0
      %v2266 = vmax.f32 %v2212, 0.0
      %v2267 = vmax.f32 %v2215, 0.0
      %v2268 = vmax.f32 %v2220, 0.0
      %v2269 = vmax.f32 %v2223, 0.0
      %v2270 = vmax.f32 %v2228, 0.0
      %v2271 = vmax.f32 %v2231, 0.0
      %v2272 = vmax.f32 %v2236, 0.0
      %v2273 = vmax.f32 %v2239, 0.0
      %v2274 = vpack.c.bf16 %v2243, %v2242
      %v2275 = vpack.c.bf16 %v2245, %v2244
      %v2276 = vpack.c.bf16 %v2247, %v2246
      %v2277 = vpack.c.bf16 %v2249, %v2248
      %v2278 = vpack.c.bf16 %v2251, %v2250
      %v2279 = vpack.c.bf16 %v2253, %v2252
      %v2280 = vpack.c.bf16 %v2255, %v2254
      %v2281 = vpack.c.bf16 %v2257, %v2256
      %v2282 = vpack.c.bf16 %v2259, %v2258
      %v2283 = vpack.c.bf16 %v2261, %v2260
      %v2284 = vpack.c.bf16 %v2263, %v2262
      %v2285 = vpack.c.bf16 %v2265, %v2264
      %v2286 = vpack.c.bf16 %v2267, %v2266
      %v2287 = vpack.c.bf16 %v2269, %v2268
      %v2288 = vpack.c.bf16 %v2271, %v2270
      %v2289 = vpack.c.bf16 %v2273, %v2272
      %v2290 = vld [vmem:[%s5] sm:$0xf]
      %v2291 = vld [vmem:[%s5 + $0x4] sm:$0xf]
      %v2292 = vld [vmem:[%s5 + $0x8] sm:$0xf]
      %v2293 = vld [vmem:[%s5 + $0xc] sm:$0xf]
      %v2294 = vld [vmem:[%s5 + $0x10] sm:$0xf]
      %v2295 = vld [vmem:[%s5 + $0x14] sm:$0xf]
      %v2296 = vld [vmem:[%s5 + $0x18] sm:$0xf]
      %v2297 = vld [vmem:[%s5 + $0x1c] sm:$0xf]
      %v2298 = vld [vmem:[%s5 + $0x20] sm:$0xf]
      %v2299 = vld [vmem:[%s5 + $0x24] sm:$0xf]
      %v2300 = vld [vmem:[%s5 + $0x28] sm:$0xf]
      %v2301 = vld [vmem:[%s5 + $0x2c] sm:$0xf]
      %v2302 = vld [vmem:[%s5 + $0x30] sm:$0xf]
      %v2303 = vld [vmem:[%s5 + $0x34] sm:$0xf]
      %v2304 = vld [vmem:[%s5 + $0x38] sm:$0xf]
      %v2305 = vld [vmem:[%s5 + $0x3c] sm:$0xf]
      %v2306 = vld [vmem:[%s6] sm:$0x1]
      %v2308 = vlaneseq
      %v2309 = vshrl.u32 %v2308, 7
      %v2310 = vsub.s32 0, %v2309
      %v2311 = vrot.slane %v2306, %v2310
      %v2329 = vunpack.c.l.b16 %v2290
      %v2330 = vunpack.c.l.b16 %v2291
      %v2331 = vunpack.c.l.b16 %v2292
      %v2332 = vunpack.c.l.b16 %v2293
      %v2333 = vunpack.c.l.b16 %v2294
      %v2334 = vunpack.c.l.b16 %v2295
      %v2335 = vunpack.c.l.b16 %v2296
      %v2336 = vunpack.c.l.b16 %v2297
      %v2337 = vunpack.c.l.b16 %v2298
      %v2338 = vunpack.c.l.b16 %v2299
      %v2339 = vunpack.c.l.b16 %v2300
      %v2340 = vunpack.c.l.b16 %v2301
      %v2341 = vunpack.c.l.b16 %v2302
      %v2342 = vunpack.c.l.b16 %v2303
      %v2343 = vunpack.c.l.b16 %v2304
      %v2344 = vunpack.c.l.b16 %v2305
      %v2345 = vpack.c.b16 %v2330, %v2329
      %v2346 = vpack.c.b16 %v2332, %v2331
      %v2347 = vpack.c.b16 %v2334, %v2333
      %v2348 = vpack.c.b16 %v2336, %v2335
      %v2349 = vpack.c.b16 %v2338, %v2337
      %v2350 = vpack.c.b16 %v2340, %v2339
      %v2351 = vpack.c.b16 %v2342, %v2341
      %v2352 = vpack.c.b16 %v2344, %v2343
      %2361 = vmatprep.subr.bf16.mxu0 0
      %2362 = vmatpush1.bf16.msra.mxu0 %v2345
      %2363 = vmatprep.subr.bf16.mxu0 0
      %2364 = vmatpush1.bf16.msra.mxu0 %v2346
      %2365 = vmatprep.subr.bf16.mxu0 0
      %2366 = vmatpush1.bf16.msra.mxu0 %v2347
      %2367 = vmatprep.subr.bf16.mxu0 0
      %2368 = vmatpush1.bf16.msra.mxu0 %v2348
      %2369 = vmatprep.subr.bf16.mxu0 0
      %2370 = vmatpush1.bf16.msra.mxu0 %v2349
      %2371 = vmatprep.subr.bf16.mxu0 0
      %2372 = vmatpush1.bf16.msra.mxu0 %v2350
      %2373 = vmatprep.subr.bf16.mxu0 0
      %2374 = vmatpush1.bf16.msra.mxu0 %v2351
      %2375 = vmatprep.subr.bf16.mxu0 0
      %2376 = vmatpush1.bf16.msra.mxu0 %v2352
      %2377 = vmatprep.subr.bf16.mxu0 0
      %2378 = vmatpush1.bf16.msra.mxu0 0
      %2379 = vmatprep.subr.bf16.mxu0 0
      %2380 = vmatpush1.bf16.msra.mxu0 0
      %2381 = vmatprep.subr.bf16.mxu0 0
      %2382 = vmatpush1.bf16.msra.mxu0 0
      %2383 = vmatprep.subr.bf16.mxu0 0
      %2384 = vmatpush1.bf16.msra.mxu0 0
      %2385 = vmatprep.subr.bf16.mxu0 0
      %2386 = vmatpush1.bf16.msra.mxu0 0
      %2387 = vmatprep.subr.bf16.mxu0 0
      %2388 = vmatpush1.bf16.msra.mxu0 0
      %2389 = vmatprep.subr.bf16.mxu0 0
      %2390 = vmatpush1.bf16.msra.mxu0 0
      %2391 = vmatprep.subr.bf16.mxu0 0
      %2392 = vmatpush1.bf16.msra.mxu0 0
      %2393 = vmatprep.mubr.bf16.mxu0 0
      %2394 = vmatmul.mubr.bf16.gmra.mrb[0].mxu0 %v2274
      %v2395 = vpop.f32.mrb[0].mxu0
      %v2396 = vadd.f32 %v2311, %v2395
      %v2397 = vpop.f32.mrb[0].mxu0
      %v2398 = vpop.f32.mrb[0].mxu0
      %v2399 = vadd.f32 %v2311, %v2398
      %v2400 = vpop.f32.mrb[0].mxu0
      %2401 = vmatprep.mubr.bf16.mxu0 0
      %2402 = vmatmul.mubr.bf16.gmra.mrb[0].mxu0 %v2275
      %v2403 = vpop.f32.mrb[0].mxu0
      %v2404 = vadd.f32 %v2311, %v2403
      %v2405 = vpop.f32.mrb[0].mxu0
      %v2406 = vpop.f32.mrb[0].mxu0
      %v2407 = vadd.f32 %v2311, %v2406
      %v2408 = vpop.f32.mrb[0].mxu0
      %2409 = vmatprep.mubr.bf16.mxu0 0
      %2410 = vmatmul.mubr.bf16.gmra.mrb[0].mxu0 %v2276
      %v2411 = vpop.f32.mrb[0].mxu0
      %v2412 = vadd.f32 %v2311, %v2411
      %v2413 = vpop.f32.mrb[0].mxu0
      %v2414 = vpop.f32.mrb[0].mxu0
      %v2415 = vadd.f32 %v2311, %v2414
      %v2416 = vpop.f32.mrb[0].mxu0
      %2417 = vmatprep.mubr.bf16.mxu0 0
      %2418 = vmatmul.mubr.bf16.gmra.mrb[0].mxu0 %v2277
      %v2419 = vpop.f32.mrb[0].mxu0
      %v2420 = vadd.f32 %v2311, %v2419
      %v2421 = vpop.f32.mrb[0].mxu0
      %v2422 = vpop.f32.mrb[0].mxu0
      %v2423 = vadd.f32 %v2311, %v2422
      %v2424 = vpop.f32.mrb[0].mxu0
      %2425 = vmatprep.mubr.bf16.mxu0 0
      %2426 = vmatmul.mubr.bf16.gmra.mrb[0].mxu0 %v2278
      %v2427 = vpop.f32.mrb[0].mxu0
      %v2428 = vadd.f32 %v2311, %v2427
      %v2429 = vpop.f32.mrb[0].mxu0
      %v2430 = vpop.f32.mrb[0].mxu0
      %v2431 = vadd.f32 %v2311, %v2430
      %v2432 = vpop.f32.mrb[0].mxu0
      %2433 = vmatprep.mubr.bf16.mxu0 0
      %2434 = vmatmul.mubr.bf16.gmra.mrb[0].mxu0 %v2279
      %v2435 = vpop.f32.mrb[0].mxu0
      %v2436 = vadd.f32 %v2311, %v2435
      %v2437 = vpop.f32.mrb[0].mxu0
      %v2438 = vpop.f32.mrb[0].mxu0
      %v2439 = vadd.f32 %v2311, %v2438
      %v2440 = vpop.f32.mrb[0].mxu0
      %2441 = vmatprep.mubr.bf16.mxu0 0
      %2442 = vmatmul.mubr.bf16.gmra.mrb[0].mxu0 %v2280
      %v2443 = vpop.f32.mrb[0].mxu0
      %v2444 = vadd.f32 %v2311, %v2443
      %v2445 = vpop.f32.mrb[0].mxu0
      %v2446 = vpop.f32.mrb[0].mxu0
      %v2447 = vadd.f32 %v2311, %v2446
      %v2448 = vpop.f32.mrb[0].mxu0
      %2449 = vmatprep.mubr.bf16.mxu0 0
      %2450 = vmatmul.mubr.bf16.gmra.mrb[0].mxu0 %v2281
      %v2451 = vpop.f32.mrb[0].mxu0
      %v2452 = vadd.f32 %v2311, %v2451
      %v2453 = vpop.f32.mrb[0].mxu0
      %v2454 = vpop.f32.mrb[0].mxu0
      %v2455 = vadd.f32 %v2311, %v2454
      %v2456 = vpop.f32.mrb[0].mxu0
      %2457 = vmatprep.mubr.bf16.mxu0 0
      %2458 = vmatmul.mubr.bf16.gmra.mrb[0].mxu0 %v2282
      %v2459 = vpop.f32.mrb[0].mxu0
      %v2460 = vadd.f32 %v2311, %v2459
      %v2461 = vpop.f32.mrb[0].mxu0
      %v2462 = vpop.f32.mrb[0].mxu0
      %v2463 = vadd.f32 %v2311, %v2462
      %v2464 = vpop.f32.mrb[0].mxu0
      %2465 = vmatprep.mubr.bf16.mxu0 0
      %2466 = vmatmul.mubr.bf16.gmra.mrb[0].mxu0 %v2283
      %v2467 = vpop.f32.mrb[0].mxu0
      %v2468 = vadd.f32 %v2311, %v2467
      %v2469 = vpop.f32.mrb[0].mxu0
      %v2470 = vpop.f32.mrb[0].mxu0
      %v2471 = vadd.f32 %v2311, %v2470
      %v2472 = vpop.f32.mrb[0].mxu0
      %2473 = vmatprep.mubr.bf16.mxu0 0
      %2474 = vmatmul.mubr.bf16.gmra.mrb[0].mxu0 %v2284
      %v2475 = vpop.f32.mrb[0].mxu0
      %v2476 = vadd.f32 %v2311, %v2475
      %v2477 = vpop.f32.mrb[0].mxu0
      %v2478 = vpop.f32.mrb[0].mxu0
      %v2479 = vadd.f32 %v2311, %v2478
      %v2480 = vpop.f32.mrb[0].mxu0
      %2481 = vmatprep.mubr.bf16.mxu0 0
      %2482 = vmatmul.mubr.bf16.gmra.mrb[0].mxu0 %v2285
      %v2483 = vpop.f32.mrb[0].mxu0
      %v2484 = vadd.f32 %v2311, %v2483
      %v2485 = vpop.f32.mrb[0].mxu0
      %v2486 = vpop.f32.mrb[0].mxu0
      %v2487 = vadd.f32 %v2311, %v2486
      %v2488 = vpop.f32.mrb[0].mxu0
      %2489 = vmatprep.mubr.bf16.mxu0 0
      %2490 = vmatmul.mubr.bf16.gmra.mrb[0].mxu0 %v2286
      %v2491 = vpop.f32.mrb[0].mxu0
      %v2492 = vadd.f32 %v2311, %v2491
      %v2493 = vpop.f32.mrb[0].mxu0
      %v2494 = vpop.f32.mrb[0].mxu0
      %v2495 = vadd.f32 %v2311, %v2494
      %v2496 = vpop.f32.mrb[0].mxu0
      %2497 = vmatprep.mubr.bf16.mxu0 0
      %2498 = vmatmul.mubr.bf16.gmra.mrb[0].mxu0 %v2287
      %v2499 = vpop.f32.mrb[0].mxu0
      %v2500 = vadd.f32 %v2311, %v2499
      %v2501 = vpop.f32.mrb[0].mxu0
      %v2502 = vpop.f32.mrb[0].mxu0
      %v2503 = vadd.f32 %v2311, %v2502
      %v2504 = vpop.f32.mrb[0].mxu0
      %2505 = vmatprep.mubr.bf16.mxu0 0
      %2506 = vmatmul.mubr.bf16.gmra.mrb[0].mxu0 %v2288
      %v2507 = vpop.f32.mrb[0].mxu0
      %v2508 = vadd.f32 %v2311, %v2507
      %v2509 = vpop.f32.mrb[0].mxu0
      %v2510 = vpop.f32.mrb[0].mxu0
      %v2511 = vadd.f32 %v2311, %v2510
      %v2512 = vpop.f32.mrb[0].mxu0
      %2513 = vmatprep.mubr.bf16.mxu0 0
      %2514 = vmatmul.mubr.bf16.gmra.mrb[0].mxu0 %v2289
      %v2515 = vpop.f32.mrb[0].mxu0
      %v2516 = vadd.f32 %v2311, %v2515
      %v2517 = vpop.f32.mrb[0].mxu0
      %v2518 = vpop.f32.mrb[0].mxu0
      %v2519 = vadd.f32 %v2311, %v2518
      %v2520 = vpop.f32.mrb[0].mxu0
      %2521 = vdwg.mxu0
      %v2522 = vmax.f32 %v2396, 0.0
      %v2523 = vmax.f32 %v2399, 0.0
      %v2524 = vmax.f32 %v2404, 0.0
      %v2525 = vmax.f32 %v2407, 0.0
      %v2526 = vmax.f32 %v2412, 0.0
      %v2527 = vmax.f32 %v2415, 0.0
      %v2528 = vmax.f32 %v2420, 0.0
      %v2529 = vmax.f32 %v2423, 0.0
      %v2530 = vmax.f32 %v2428, 0.0
      %v2531 = vmax.f32 %v2431, 0.0
      %v2532 = vmax.f32 %v2436, 0.0
      %v2533 = vmax.f32 %v2439, 0.0
      %v2534 = vmax.f32 %v2444, 0.0
      %v2535 = vmax.f32 %v2447, 0.0
      %v2536 = vmax.f32 %v2452, 0.0
      %v2537 = vmax.f32 %v2455, 0.0
      %v2538 = vmax.f32 %v2460, 0.0
      %v2539 = vmax.f32 %v2463, 0.0
      %v2540 = vmax.f32 %v2468, 0.0
      %v2541 = vmax.f32 %v2471, 0.0
      %v2542 = vmax.f32 %v2476, 0.0
      %v2543 = vmax.f32 %v2479, 0.0
      %v2544 = vmax.f32 %v2484, 0.0
      %v2545 = vmax.f32 %v2487, 0.0
      %v2546 = vmax.f32 %v2492, 0.0
      %v2547 = vmax.f32 %v2495, 0.0
      %v2548 = vmax.f32 %v2500, 0.0
      %v2549 = vmax.f32 %v2503, 0.0
      %v2550 = vmax.f32 %v2508, 0.0
      %v2551 = vmax.f32 %v2511, 0.0
      %v2552 = vmax.f32 %v2516, 0.0
      %v2553 = vmax.f32 %v2519, 0.0
      %v2554 = vpack.c.bf16 %v2523, %v2522
      %v2555 = vpack.c.bf16 %v2525, %v2524
      %v2556 = vpack.c.bf16 %v2527, %v2526
      %v2557 = vpack.c.bf16 %v2529, %v2528
      %v2558 = vpack.c.bf16 %v2531, %v2530
      %v2559 = vpack.c.bf16 %v2533, %v2532
      %v2560 = vpack.c.bf16 %v2535, %v2534
      %v2561 = vpack.c.bf16 %v2537, %v2536
      %v2562 = vpack.c.bf16 %v2539, %v2538
      %v2563 = vpack.c.bf16 %v2541, %v2540
      %v2564 = vpack.c.bf16 %v2543, %v2542
      %v2565 = vpack.c.bf16 %v2545, %v2544
      %v2566 = vpack.c.bf16 %v2547, %v2546
      %v2567 = vpack.c.bf16 %v2549, %v2548
      %v2568 = vpack.c.bf16 %v2551, %v2550
      %v2569 = vpack.c.bf16 %v2553, %v2552
      %v2570 = vld [vmem:[%s7] sm:$0xf]
      %v2571 = vld [vmem:[%s7 + $0x4] sm:$0xf]
      %v2572 = vld [vmem:[%s7 + $0x8] sm:$0xf]
      %v2573 = vld [vmem:[%s7 + $0xc] sm:$0xf]
      %v2574 = vld [vmem:[%s7 + $0x10] sm:$0xf]
      %v2575 = vld [vmem:[%s7 + $0x14] sm:$0xf]
      %v2576 = vld [vmem:[%s7 + $0x18] sm:$0xf]
      %v2577 = vld [vmem:[%s7 + $0x1c] sm:$0xf]
      %v2578 = vld [vmem:[%s8] sm:$0x1]
      %v2580 = vlaneseq
      %v2581 = vshrl.u32 %v2580, 7
      %v2582 = vsub.s32 0, %v2581
      %v2583 = vrot.slane %v2578, %v2582
      %v2593 = vunpack.c.l.b16 %v2570
      %v2594 = vunpack.c.l.b16 %v2571
      %v2595 = vunpack.c.l.b16 %v2572
      %v2596 = vunpack.c.l.b16 %v2573
      %v2597 = vunpack.c.l.b16 %v2574
      %v2598 = vunpack.c.l.b16 %v2575
      %v2599 = vunpack.c.l.b16 %v2576
      %v2600 = vunpack.c.l.b16 %v2577
      %v2601 = vpack.c.b16 %v2594, %v2593
      %v2602 = vpack.c.b16 %v2596, %v2595
      %v2603 = vpack.c.b16 %v2598, %v2597
      %v2604 = vpack.c.b16 %v2600, %v2599
      %vm2609 = vcmask 523264
      %v2611 = vsel %vm2609, %v2554, 0
      %v2614 = vsel %vm2609, %v2555, 0
      %v2617 = vsel %vm2609, %v2556, 0
      %v2620 = vsel %vm2609, %v2557, 0
      %v2623 = vsel %vm2609, %v2558, 0
      %v2626 = vsel %vm2609, %v2559, 0
      %v2629 = vsel %vm2609, %v2560, 0
      %v2632 = vsel %vm2609, %v2561, 0
      %v2635 = vsel %vm2609, %v2562, 0
      %v2638 = vsel %vm2609, %v2563, 0
      %v2641 = vsel %vm2609, %v2564, 0
      %v2644 = vsel %vm2609, %v2565, 0
      %v2647 = vsel %vm2609, %v2566, 0
      %v2650 = vsel %vm2609, %v2567, 0
      %v2653 = vsel %vm2609, %v2568, 0
      %v2656 = vsel %vm2609, %v2569, 0
      %2658 = vmatprep.subr.bf16.mxu0 0
      %2659 = vmatpush1.bf16.msra.mxu0 %v2601
      %2660 = vmatprep.subr.bf16.mxu0 0
      %2661 = vmatpush1.bf16.msra.mxu0 %v2602
      %2662 = vmatprep.subr.bf16.mxu0 0
      %2663 = vmatpush1.bf16.msra.mxu0 %v2603
      %2664 = vmatprep.subr.bf16.mxu0 0
      %2665 = vmatpush1.bf16.msra.mxu0 %v2604
      %2666 = vmatprep.subr.bf16.mxu0 0
      %2667 = vmatpush1.bf16.msra.mxu0 0
      %2668 = vmatprep.subr.bf16.mxu0 0
      %2669 = vmatpush1.bf16.msra.mxu0 0
      %2670 = vmatprep.subr.bf16.mxu0 0
      %2671 = vmatpush1.bf16.msra.mxu0 0
      %2672 = vmatprep.subr.bf16.mxu0 0
      %2673 = vmatpush1.bf16.msra.mxu0 0
      %2674 = vmatprep.subr.bf16.mxu0 0
      %2675 = vmatpush1.bf16.msra.mxu0 0
      %2676 = vmatprep.subr.bf16.mxu0 0
      %2677 = vmatpush1.bf16.msra.mxu0 0
      %2678 = vmatprep.subr.bf16.mxu0 0
      %2679 = vmatpush1.bf16.msra.mxu0 0
      %2680 = vmatprep.subr.bf16.mxu0 0
      %2681 = vmatpush1.bf16.msra.mxu0 0
      %2682 = vmatprep.subr.bf16.mxu0 0
      %2683 = vmatpush1.bf16.msra.mxu0 0
      %2684 = vmatprep.subr.bf16.mxu0 0
      %2685 = vmatpush1.bf16.msra.mxu0 0
      %2686 = vmatprep.subr.bf16.mxu0 0
      %2687 = vmatpush1.bf16.msra.mxu0 0
      %2688 = vmatprep.subr.bf16.mxu0 0
      %2689 = vmatpush1.bf16.msra.mxu0 0
      %2690 = vmatprep.mubr.bf16.mxu0 0
      %2691 = vmatmul.mubr.bf16.gmra.mrb[0].mxu0 %v2611
      %v2692 = vpop.f32.mrb[0].mxu0
      %v2693 = vadd.f32 %v2583, %v2692
      %v2694 = vpop.f32.mrb[0].mxu0
      %v2695 = vpop.f32.mrb[0].mxu0
      %v2696 = vadd.f32 %v2583, %v2695
      %v2697 = vpop.f32.mrb[0].mxu0
      %2698 = vmatprep.mubr.bf16.mxu0 0
      %2699 = vmatmul.mubr.bf16.gmra.mrb[0].mxu0 %v2614
      %v2700 = vpop.f32.mrb[0].mxu0
      %v2701 = vadd.f32 %v2583, %v2700
      %v2702 = vpop.f32.mrb[0].mxu0
      %v2703 = vpop.f32.mrb[0].mxu0
      %v2704 = vadd.f32 %v2583, %v2703
      %v2705 = vpop.f32.mrb[0].mxu0
      %2706 = vmatprep.mubr.bf16.mxu0 0
      %2707 = vmatmul.mubr.bf16.gmra.mrb[0].mxu0 %v2617
      %v2708 = vpop.f32.mrb[0].mxu0
      %v2709 = vadd.f32 %v2583, %v2708
      %v2710 = vpop.f32.mrb[0].mxu0
      %v2711 = vpop.f32.mrb[0].mxu0
      %v2712 = vadd.f32 %v2583, %v2711
      %v2713 = vpop.f32.mrb[0].mxu0
      %2714 = vmatprep.mubr.bf16.mxu0 0
      %2715 = vmatmul.mubr.bf16.gmra.mrb[0].mxu0 %v2620
      %v2716 = vpop.f32.mrb[0].mxu0
      %v2717 = vadd.f32 %v2583, %v2716
      %v2718 = vpop.f32.mrb[0].mxu0
      %v2719 = vpop.f32.mrb[0].mxu0
      %v2720 = vadd.f32 %v2583, %v2719
      %v2721 = vpop.f32.mrb[0].mxu0
      %2722 = vmatprep.mubr.bf16.mxu0 0
      %2723 = vmatmul.mubr.bf16.gmra.mrb[0].mxu0 %v2623
      %v2724 = vpop.f32.mrb[0].mxu0
      %v2725 = vadd.f32 %v2583, %v2724
      %v2726 = vpop.f32.mrb[0].mxu0
      %v2727 = vpop.f32.mrb[0].mxu0
      %v2728 = vadd.f32 %v2583, %v2727
      %v2729 = vpop.f32.mrb[0].mxu0
      %2730 = vmatprep.mubr.bf16.mxu0 0
      %2731 = vmatmul.mubr.bf16.gmra.mrb[0].mxu0 %v2626
      %v2732 = vpop.f32.mrb[0].mxu0
      %v2733 = vadd.f32 %v2583, %v2732
      %v2734 = vpop.f32.mrb[0].mxu0
      %v2735 = vpop.f32.mrb[0].mxu0
      %v2736 = vadd.f32 %v2583, %v2735
      %v2737 = vpop.f32.mrb[0].mxu0
      %2738 = vmatprep.mubr.bf16.mxu0 0
      %2739 = vmatmul.mubr.bf16.gmra.mrb[0].mxu0 %v2629
      %v2740 = vpop.f32.mrb[0].mxu0
      %v2741 = vadd.f32 %v2583, %v2740
      %v2742 = vpop.f32.mrb[0].mxu0
      %v2743 = vpop.f32.mrb[0].mxu0
      %v2744 = vadd.f32 %v2583, %v2743
      %v2745 = vpop.f32.mrb[0].mxu0
      %2746 = vmatprep.mubr.bf16.mxu0 0
      %2747 = vmatmul.mubr.bf16.gmra.mrb[0].mxu0 %v2632
      %v2748 = vpop.f32.mrb[0].mxu0
      %v2749 = vadd.f32 %v2583, %v2748
      %v2750 = vpop.f32.mrb[0].mxu0
      %v2751 = vpop.f32.mrb[0].mxu0
      %v2752 = vadd.f32 %v2583, %v2751
      %v2753 = vpop.f32.mrb[0].mxu0
      %2754 = vmatprep.mubr.bf16.mxu0 0
      %2755 = vmatmul.mubr.bf16.gmra.mrb[0].mxu0 %v2635
      %v2756 = vpop.f32.mrb[0].mxu0
      %v2757 = vadd.f32 %v2583, %v2756
      %v2758 = vpop.f32.mrb[0].mxu0
      %v2759 = vpop.f32.mrb[0].mxu0
      %v2760 = vadd.f32 %v2583, %v2759
      %v2761 = vpop.f32.mrb[0].mxu0
      %2762 = vmatprep.mubr.bf16.mxu0 0
      %2763 = vmatmul.mubr.bf16.gmra.mrb[0].mxu0 %v2638
      %v2764 = vpop.f32.mrb[0].mxu0
      %v2765 = vadd.f32 %v2583, %v2764
      %v2766 = vpop.f32.mrb[0].mxu0
      %v2767 = vpop.f32.mrb[0].mxu0
      %v2768 = vadd.f32 %v2583, %v2767
      %v2769 = vpop.f32.mrb[0].mxu0
      %2770 = vmatprep.mubr.bf16.mxu0 0
      %2771 = vmatmul.mubr.bf16.gmra.mrb[0].mxu0 %v2641
      %v2772 = vpop.f32.mrb[0].mxu0
      %v2773 = vadd.f32 %v2583, %v2772
      %v2774 = vpop.f32.mrb[0].mxu0
      %v2775 = vpop.f32.mrb[0].mxu0
      %v2776 = vadd.f32 %v2583, %v2775
      %v2777 = vpop.f32.mrb[0].mxu0
      %2778 = vmatprep.mubr.bf16.mxu0 0
      %2779 = vmatmul.mubr.bf16.gmra.mrb[0].mxu0 %v2644
      %v2780 = vpop.f32.mrb[0].mxu0
      %v2781 = vadd.f32 %v2583, %v2780
      %v2782 = vpop.f32.mrb[0].mxu0
      %v2783 = vpop.f32.mrb[0].mxu0
      %v2784 = vadd.f32 %v2583, %v2783
      %v2785 = vpop.f32.mrb[0].mxu0
      %2786 = vmatprep.mubr.bf16.mxu0 0
      %2787 = vmatmul.mubr.bf16.gmra.mrb[0].mxu0 %v2647
      %v2788 = vpop.f32.mrb[0].mxu0
      %v2789 = vadd.f32 %v2583, %v2788
      %v2790 = vpop.f32.mrb[0].mxu0
      %v2791 = vpop.f32.mrb[0].mxu0
      %v2792 = vadd.f32 %v2583, %v2791
      %v2793 = vpop.f32.mrb[0].mxu0
      %2794 = vmatprep.mubr.bf16.mxu0 0
      %2795 = vmatmul.mubr.bf16.gmra.mrb[0].mxu0 %v2650
      %v2796 = vpop.f32.mrb[0].mxu0
      %v2797 = vadd.f32 %v2583, %v2796
      %v2798 = vpop.f32.mrb[0].mxu0
      %v2799 = vpop.f32.mrb[0].mxu0
      %v2800 = vadd.f32 %v2583, %v2799
      %v2801 = vpop.f32.mrb[0].mxu0
      %2802 = vmatprep.mubr.bf16.mxu0 0
      %2803 = vmatmul.mubr.bf16.gmra.mrb[0].mxu0 %v2653
      %v2804 = vpop.f32.mrb[0].mxu0
      %v2805 = vadd.f32 %v2583, %v2804
      %v2806 = vpop.f32.mrb[0].mxu0
      %v2807 = vpop.f32.mrb[0].mxu0
      %v2808 = vadd.f32 %v2583, %v2807
      %v2809 = vpop.f32.mrb[0].mxu0
      %2810 = vmatprep.mubr.bf16.mxu0 0
      %2811 = vmatmul.mubr.bf16.gmra.mrb[0].mxu0 %v2656
      %v2812 = vpop.f32.mrb[0].mxu0
      %v2813 = vadd.f32 %v2583, %v2812
      %v2814 = vpop.f32.mrb[0].mxu0
      %v2815 = vpop.f32.mrb[0].mxu0
      %v2816 = vadd.f32 %v2583, %v2815
      %v2817 = vpop.f32.mrb[0].mxu0
      %2818 = vdwg.mxu0
      %v2819 = vmax.f32 %v2693, 0.0
      %v2820 = vmax.f32 %v2696, 0.0
      %v2821 = vmax.f32 %v2701, 0.0
      %v2822 = vmax.f32 %v2704, 0.0
      %v2823 = vmax.f32 %v2709, 0.0
      %v2824 = vmax.f32 %v2712, 0.0
      %v2825 = vmax.f32 %v2717, 0.0
      %v2826 = vmax.f32 %v2720, 0.0
      %v2827 = vmax.f32 %v2725, 0.0
      %v2828 = vmax.f32 %v2728, 0.0
      %v2829 = vmax.f32 %v2733, 0.0
      %v2830 = vmax.f32 %v2736, 0.0
      %v2831 = vmax.f32 %v2741, 0.0
      %v2832 = vmax.f32 %v2744, 0.0
      %v2833 = vmax.f32 %v2749, 0.0
      %v2834 = vmax.f32 %v2752, 0.0
      %v2835 = vmax.f32 %v2757, 0.0
      %v2836 = vmax.f32 %v2760, 0.0
      %v2837 = vmax.f32 %v2765, 0.0
      %v2838 = vmax.f32 %v2768, 0.0
      %v2839 = vmax.f32 %v2773, 0.0
      %v2840 = vmax.f32 %v2776, 0.0
      %v2841 = vmax.f32 %v2781, 0.0
      %v2842 = vmax.f32 %v2784, 0.0
      %v2843 = vmax.f32 %v2789, 0.0
      %v2844 = vmax.f32 %v2792, 0.0
      %v2845 = vmax.f32 %v2797, 0.0
      %v2846 = vmax.f32 %v2800, 0.0
      %v2847 = vmax.f32 %v2805, 0.0
      %v2848 = vmax.f32 %v2808, 0.0
      %v2849 = vmax.f32 %v2813, 0.0
      %v2850 = vmax.f32 %v2816, 0.0
      %v2851 = vld [vmem:[%s9] sm:$0x1]
      %v2853 = vlaneseq
      %v2854 = vshrl.u32 %v2853, 7
      %v2855 = vsub.s32 0, %v2854
      %v2856 = vrot.slane %v2851, %v2855
      %v2858 = vmul.f32 %v2819, %v2856
      %v2859 = vmul.f32 %v2820, %v2856
      %v2860 = vmul.f32 %v2821, %v2856
      %v2861 = vmul.f32 %v2822, %v2856
      %v2862 = vmul.f32 %v2823, %v2856
      %v2863 = vmul.f32 %v2824, %v2856
      %v2864 = vmul.f32 %v2825, %v2856
      %v2865 = vmul.f32 %v2826, %v2856
      %v2866 = vmul.f32 %v2827, %v2856
      %v2867 = vmul.f32 %v2828, %v2856
      %v2868 = vmul.f32 %v2829, %v2856
      %v2869 = vmul.f32 %v2830, %v2856
      %v2870 = vmul.f32 %v2831, %v2856
      %v2871 = vmul.f32 %v2832, %v2856
      %v2872 = vmul.f32 %v2833, %v2856
      %v2873 = vmul.f32 %v2834, %v2856
      %v2874 = vmul.f32 %v2835, %v2856
      %v2875 = vmul.f32 %v2836, %v2856
      %v2876 = vmul.f32 %v2837, %v2856
      %v2877 = vmul.f32 %v2838, %v2856
      %v2878 = vmul.f32 %v2839, %v2856
      %v2879 = vmul.f32 %v2840, %v2856
      %v2880 = vmul.f32 %v2841, %v2856
      %v2881 = vmul.f32 %v2842, %v2856
      %v2882 = vmul.f32 %v2843, %v2856
      %v2883 = vmul.f32 %v2844, %v2856
      %v2884 = vmul.f32 %v2845, %v2856
      %v2885 = vmul.f32 %v2846, %v2856
      %v2886 = vmul.f32 %v2847, %v2856
      %v2887 = vmul.f32 %v2848, %v2856
      %v2888 = vmul.f32 %v2849, %v2856
      %v2889 = vmul.f32 %v2850, %v2856
      %vm2890 = vcmask 261120
      %v2891 = vsel %vm2890, %v2858, 0.0
      %2892 = vadd.xlane.f32.xlu0 %v2891
      %v2893 = vpop.xlane.xlu0 %2892
      %v2894 = vsel %vm2890, %v2859, 0.0
      %2895 = vadd.xlane.f32.xlu0 %v2894
      %v2896 = vpop.xlane.xlu0 %2895
      %v2897 = vsel %vm2890, %v2860, 0.0
      %2898 = vadd.xlane.f32.xlu0 %v2897
      %v2899 = vpop.xlane.xlu0 %2898
      %v2900 = vsel %vm2890, %v2861, 0.0
      %2901 = vadd.xlane.f32.xlu0 %v2900
      %v2902 = vpop.xlane.xlu0 %2901
      %v2903 = vsel %vm2890, %v2862, 0.0
      %2904 = vadd.xlane.f32.xlu0 %v2903
      %v2905 = vpop.xlane.xlu0 %2904
      %v2906 = vsel %vm2890, %v2863, 0.0
      %2907 = vadd.xlane.f32.xlu0 %v2906
      %v2908 = vpop.xlane.xlu0 %2907
      %v2909 = vsel %vm2890, %v2864, 0.0
      %2910 = vadd.xlane.f32.xlu0 %v2909
      %v2911 = vpop.xlane.xlu0 %2910
      %v2912 = vsel %vm2890, %v2865, 0.0
      %2913 = vadd.xlane.f32.xlu0 %v2912
      %v2914 = vpop.xlane.xlu0 %2913
      %v2915 = vsel %vm2890, %v2866, 0.0
      %2916 = vadd.xlane.f32.xlu0 %v2915
      %v2917 = vpop.xlane.xlu0 %2916
      %v2918 = vsel %vm2890, %v2867, 0.0
      %2919 = vadd.xlane.f32.xlu0 %v2918
      %v2920 = vpop.xlane.xlu0 %2919
      %v2921 = vsel %vm2890, %v2868, 0.0
      %2922 = vadd.xlane.f32.xlu0 %v2921
      %v2923 = vpop.xlane.xlu0 %2922
      %v2924 = vsel %vm2890, %v2869, 0.0
      %2925 = vadd.xlane.f32.xlu0 %v2924
      %v2926 = vpop.xlane.xlu0 %2925
      %v2927 = vsel %vm2890, %v2870, 0.0
      %2928 = vadd.xlane.f32.xlu0 %v2927
      %v2929 = vpop.xlane.xlu0 %2928
      %v2930 = vsel %vm2890, %v2871, 0.0
      %2931 = vadd.xlane.f32.xlu0 %v2930
      %v2932 = vpop.xlane.xlu0 %2931
      %v2933 = vsel %vm2890, %v2872, 0.0
      %2934 = vadd.xlane.f32.xlu0 %v2933
      %v2935 = vpop.xlane.xlu0 %2934
      %v2936 = vsel %vm2890, %v2873, 0.0
      %2937 = vadd.xlane.f32.xlu0 %v2936
      %v2938 = vpop.xlane.xlu0 %2937
      %v2939 = vsel %vm2890, %v2874, 0.0
      %2940 = vadd.xlane.f32.xlu0 %v2939
      %v2941 = vpop.xlane.xlu0 %2940
      %v2942 = vsel %vm2890, %v2875, 0.0
      %2943 = vadd.xlane.f32.xlu0 %v2942
      %v2944 = vpop.xlane.xlu0 %2943
      %v2945 = vsel %vm2890, %v2876, 0.0
      %2946 = vadd.xlane.f32.xlu0 %v2945
      %v2947 = vpop.xlane.xlu0 %2946
      %v2948 = vsel %vm2890, %v2877, 0.0
      %2949 = vadd.xlane.f32.xlu0 %v2948
      %v2950 = vpop.xlane.xlu0 %2949
      %v2951 = vsel %vm2890, %v2878, 0.0
      %2952 = vadd.xlane.f32.xlu0 %v2951
      %v2953 = vpop.xlane.xlu0 %2952
      %v2954 = vsel %vm2890, %v2879, 0.0
      %2955 = vadd.xlane.f32.xlu0 %v2954
      %v2956 = vpop.xlane.xlu0 %2955
      %v2957 = vsel %vm2890, %v2880, 0.0
      %2958 = vadd.xlane.f32.xlu0 %v2957
      %v2959 = vpop.xlane.xlu0 %2958
      %v2960 = vsel %vm2890, %v2881, 0.0
      %2961 = vadd.xlane.f32.xlu0 %v2960
      %v2962 = vpop.xlane.xlu0 %2961
      %v2963 = vsel %vm2890, %v2882, 0.0
      %2964 = vadd.xlane.f32.xlu0 %v2963
      %v2965 = vpop.xlane.xlu0 %2964
      %v2966 = vsel %vm2890, %v2883, 0.0
      %2967 = vadd.xlane.f32.xlu0 %v2966
      %v2968 = vpop.xlane.xlu0 %2967
      %v2969 = vsel %vm2890, %v2884, 0.0
      %2970 = vadd.xlane.f32.xlu0 %v2969
      %v2971 = vpop.xlane.xlu0 %2970
      %v2972 = vsel %vm2890, %v2885, 0.0
      %2973 = vadd.xlane.f32.xlu0 %v2972
      %v2974 = vpop.xlane.xlu0 %2973
      %v2975 = vsel %vm2890, %v2886, 0.0
      %2976 = vadd.xlane.f32.xlu0 %v2975
      %v2977 = vpop.xlane.xlu0 %2976
      %v2978 = vsel %vm2890, %v2887, 0.0
      %2979 = vadd.xlane.f32.xlu0 %v2978
      %v2980 = vpop.xlane.xlu0 %2979
      %v2981 = vsel %vm2890, %v2888, 0.0
      %2982 = vadd.xlane.f32.xlu0 %v2981
      %v2983 = vpop.xlane.xlu0 %2982
      %v2984 = vsel %vm2890, %v2889, 0.0
      %2985 = vadd.xlane.f32.xlu0 %v2984
      %v2986 = vpop.xlane.xlu0 %2985
      %s2987 = sld [smem:[#allocation2]]
      %v2988 = vstv %s2987
      %v2989 = vadd.f32 %v2893, %v2988
      %v2990 = vadd.f32 %v2896, %v2988
      %v2991 = vadd.f32 %v2899, %v2988
      %v2992 = vadd.f32 %v2902, %v2988
      %v2993 = vadd.f32 %v2905, %v2988
      %v2994 = vadd.f32 %v2908, %v2988
      %v2995 = vadd.f32 %v2911, %v2988
      %v2996 = vadd.f32 %v2914, %v2988
      %v2997 = vadd.f32 %v2917, %v2988
      %v2998 = vadd.f32 %v2920, %v2988
      %v2999 = vadd.f32 %v2923, %v2988
      %v3000 = vadd.f32 %v2926, %v2988
      %v3001 = vadd.f32 %v2929, %v2988
      %v3002 = vadd.f32 %v2932, %v2988
      %v3003 = vadd.f32 %v2935, %v2988
      %v3004 = vadd.f32 %v2938, %v2988
      %v3005 = vadd.f32 %v2941, %v2988
      %v3006 = vadd.f32 %v2944, %v2988
      %v3007 = vadd.f32 %v2947, %v2988
      %v3008 = vadd.f32 %v2950, %v2988
      %v3009 = vadd.f32 %v2953, %v2988
      %v3010 = vadd.f32 %v2956, %v2988
      %v3011 = vadd.f32 %v2959, %v2988
      %v3012 = vadd.f32 %v2962, %v2988
      %v3013 = vadd.f32 %v2965, %v2988
      %v3014 = vadd.f32 %v2968, %v2988
      %v3015 = vadd.f32 %v2971, %v2988
      %v3016 = vadd.f32 %v2974, %v2988
      %v3017 = vadd.f32 %v2977, %v2988
      %v3018 = vadd.f32 %v2980, %v2988
      %v3019 = vadd.f32 %v2983, %v2988
      %v3020 = vadd.f32 %v2986, %v2988
      %vm3021 = vcmask 7168
      %3022 = vst.msk [vmem:[%s392] sm:$0xff] %vm3021, %v2989
      %3023 = vst.msk [vmem:[%s392 + $0x8] sm:$0xff] %vm3021, %v2990
      %3024 = vst.msk [vmem:[%s392 + $0x10] sm:$0xff] %vm3021, %v2991
      %3025 = vst.msk [vmem:[%s392 + $0x18] sm:$0xff] %vm3021, %v2992
      %3026 = vst.msk [vmem:[%s392 + $0x20] sm:$0xff] %vm3021, %v2993
      %3027 = vst.msk [vmem:[%s392 + $0x28] sm:$0xff] %vm3021, %v2994
      %3028 = vst.msk [vmem:[%s392 + $0x30] sm:$0xff] %vm3021, %v2995
      %3029 = vst.msk [vmem:[%s392 + $0x38] sm:$0xff] %vm3021, %v2996
      %3030 = vst.msk [vmem:[%s392 + $0x40] sm:$0xff] %vm3021, %v2997
      %3031 = vst.msk [vmem:[%s392 + $0x48] sm:$0xff] %vm3021, %v2998
      %3032 = vst.msk [vmem:[%s392 + $0x50] sm:$0xff] %vm3021, %v2999
      %3033 = vst.msk [vmem:[%s392 + $0x58] sm:$0xff] %vm3021, %v3000
      %3034 = vst.msk [vmem:[%s392 + $0x60] sm:$0xff] %vm3021, %v3001
      %3035 = vst.msk [vmem:[%s392 + $0x68] sm:$0xff] %vm3021, %v3002
      %3036 = vst.msk [vmem:[%s392 + $0x70] sm:$0xff] %vm3021, %v3003
      %3037 = vst.msk [vmem:[%s392 + $0x78] sm:$0xff] %vm3021, %v3004
      %3038 = vst.msk [vmem:[%s392 + $0x80] sm:$0xff] %vm3021, %v3005
      %3039 = vst.msk [vmem:[%s392 + $0x88] sm:$0xff] %vm3021, %v3006
      %3040 = vst.msk [vmem:[%s392 + $0x90] sm:$0xff] %vm3021, %v3007
      %3041 = vst.msk [vmem:[%s392 + $0x98] sm:$0xff] %vm3021, %v3008
      %3042 = vst.msk [vmem:[%s392 + $0xa0] sm:$0xff] %vm3021, %v3009
      %3043 = vst.msk [vmem:[%s392 + $0xa8] sm:$0xff] %vm3021, %v3010
      %3044 = vst.msk [vmem:[%s392 + $0xb0] sm:$0xff] %vm3021, %v3011
      %3045 = vst.msk [vmem:[%s392 + $0xb8] sm:$0xff] %vm3021, %v3012
      %3046 = vst.msk [vmem:[%s392 + $0xc0] sm:$0xff] %vm3021, %v3013
      %3047 = vst.msk [vmem:[%s392 + $0xc8] sm:$0xff] %vm3021, %v3014
      %3048 = vst.msk [vmem:[%s392 + $0xd0] sm:$0xff] %vm3021, %v3015
      %3049 = vst.msk [vmem:[%s392 + $0xd8] sm:$0xff] %vm3021, %v3016
      %3050 = vst.msk [vmem:[%s392 + $0xe0] sm:$0xff] %vm3021, %v3017
      %3051 = vst.msk [vmem:[%s392 + $0xe8] sm:$0xff] %vm3021, %v3018
      %3052 = vst.msk [vmem:[%s392 + $0xf0] sm:$0xff] %vm3021, %v3019
      %3053 = vst.msk [vmem:[%s392 + $0xf8] sm:$0xff] %vm3021, %v3020
      %s3054 = smul.u32 32, %s23
      %p3055 = scmp.lt.s32.totalorder %s3054, 63
      %s3056 = scalar_select %p3055, %s3054, 63
      %s3057 = smul.addr %s3056, 8
      %s3058 = scalar_lea.vmem %s11, %s3057
      // Predicated region
      $region65: #{mlp_pallas.1} parent=63 // pred_check
        %p3059 = pneg %p277
      $region66: #{mlp_pallas.1} parent=63 // pred_check_branch
        %3061 = sbr.rel (%p3059) target = $region68
      $region67: #{mlp_pallas.1} parent=63 // pred_region
        %s3062 = smul.u32 32, %s23
      $region68: #{mlp_pallas.1} parent=63 // pred_fallthru
        _
    $region64: #{mlp_pallas.1} parent=5 // pred_fallthru
      _
    %p3063 = scmp.le.s32.totalorder 2, %s18
    // Predicated region
    $region69: #{mlp_pallas.1} parent=5 // pred_check
      %p3064 = pneg %p3063
    $region70: #{mlp_pallas.1} parent=5 // pred_check_branch
      %3066 = sbr.rel (%p3064) target = $region72
    $region71: #{mlp_pallas.1} parent=5 // pred_region
      %s3067 = ssub.s32 %s18, 2
      // Predicated region
      $region73: #{mlp_pallas.1} parent=71 // pred_check
        %p3068 = pneg %p283
      $region74: #{mlp_pallas.1} parent=71 // pred_check_branch
        %3070 = sbr.rel (%p3068) target = $region76
      $region75: #{mlp_pallas.1} parent=71 // pred_region
        %s3071 = smul.u32 32, %s24
        %p3072 = scmp.lt.s32.totalorder %s3071, 63
        %s3073 = scalar_select %p3072, %s3071, 63
        %s3074 = smul.addr %s3073, 8
        %s3075 = scalar_lea.vmem %s11, %s3074
      $region76: #{mlp_pallas.1} parent=71 // pred_fallthru
        _
    $region72: #{mlp_pallas.1} parent=5 // pred_fallthru
      _
  $region6: #{mlp_pallas.1} parent=0 // loop_footer
    %s22 = sadd.s32 1, %s18
  $region7: #{mlp_pallas.1} parent=0 // loop_footer_branch
    %17 = sbr.rel target = $region3
  $region8: #{mlp_pallas.1} parent=0 // loop_exit
    _

</llo_original>
